<compile_context>
chip_gen: v5e
topology: v5e:2x2
jax: 0.10.0
libtpu: 0.0.40
codegen_flags: <defaults>
</compile_context>

<pallas_src>
import jax
import jax.numpy as jnp
from jax import lax
from jax.experimental import pallas as pl
from jax.experimental.pallas import tpu as pltpu


# ---------------------------------------------------------------------------
# Algebraic composition of the module's weights (exact; done once, in f32).
# ---------------------------------------------------------------------------
def compose_decoder_params(params):
    """Fold m_up3 -> m_up2 -> m_up1 -> m_tail into one 3x3 conv on the coarse grid.

    Returns:
      w_taps: (9, out_nc*64, cin+1) f32, tap-major (sh*3+sw); last input channel is the
              "ones" channel that carries the composed deconv biases.
      b_full: (out_nc*64, 1) f32, the tail bias replicated per sub-pixel.
    """
    f32 = jnp.float32
    hi = lax.Precision.HIGHEST
    w1, b1 = params["up3_w"].astype(f32), params["up3_b"].astype(f32)   # (c3, c2, 2, 2)
    w2, b2 = params["up2_w"].astype(f32), params["up2_b"].astype(f32)   # (c2, c1, 2, 2)
    w3, b3 = params["up1_w"].astype(f32), params["up1_b"].astype(f32)   # (c1, c0, 2, 2)
    wt, bt = params["tail_w"].astype(f32), params["tail_b"].astype(f32) # (o,  c0, 3, 3)
    cin = w1.shape[0]
    c0 = w3.shape[1]
    o = wt.shape[0]

    # -- three ConvTranspose2d(k=2, s=2) compose exactly into one k=8, s=8 deconv --
    # WD[i, c, 4k+2m+p, 4l+2n+q] = sum_{a,b} W1[i,a,k,l] W2[a,b,m,n] W3[b,c,p,q]
    t12 = jnp.einsum("iakl,abmn->ibkmln", w1, w2, precision=hi)
    wd = jnp.einsum("ibkmln,bcpq->ickmplnq", t12, w3, precision=hi).reshape(cin, c0, 8, 8)
    # per-sub-pixel bias of the composed deconv (b1 flows through W2,W3; b2 through W3; + b3)
    tb3 = jnp.einsum("b,bcpq->cpq", b2, w3, precision=hi)                 # dep. (dy%2, dx%2)
    tb12 = jnp.einsum("a,abmn,bcpq->cmpnq", b1, w2, w3, precision=hi)     # dep. (dy%4, dx%4)
    bd = (b3[:, None, None]
          + jnp.tile(tb3, (1, 4, 4))
          + jnp.tile(tb12.reshape(c0, 4, 4), (1, 2, 2)))                  # (c0, 8, 8)
    wd_aug = jnp.concatenate([wd, bd[None]], axis=0)                      # (cin+1, c0, 8, 8)

    # -- fold the 3x3 tail conv (cross-correlation, zero pad 1) through the 8x upsample --
    c = cin + 1
    dyv = jnp.arange(8)
    wf = jnp.zeros((o, 8, 8, c, 3, 3), f32)
    for a in range(3):                                  # tail row tap, fine offset a-1
        rsrc = (dyv + (a - 1)) % 8                      # source sub-pixel row in wd_aug
        rone = jax.nn.one_hot((dyv + (a - 1)) // 8 + 1, 3, dtype=f32)    # coarse row shift
        for bb in range(3):                             # tail col tap
            csrc = (dyv + (bb - 1)) % 8
            cone = jax.nn.one_hot((dyv + (bb - 1)) // 8 + 1, 3, dtype=f32)
            m = jnp.einsum("oc,icyx->oiyx", wt[:, :, a, bb], wd_aug, precision=hi)
            m = m[:, :, rsrc, :][:, :, :, csrc]          # (o, c, dy, dx) gathered sub-pixels
            wf = wf + jnp.einsum("oide,ds,et->odeist", m, rone, cone, precision=hi)

    # tap-major weight stack: w_taps[sh*3+sw, o*64+dy*8+dx, i]
    w_taps = jnp.transpose(wf, (4, 5, 0, 1, 2, 3)).reshape(9, o * 64, c)
    b_full = jnp.repeat(bt, 64).reshape(o * 64, 1)
    return w_taps, b_full


# ---------------------------------------------------------------------------
# VMEM-budgeted row-tile selection (explicit budgeting per review, gen-agnostic).
# ---------------------------------------------------------------------------
def _round_up(x, m):
    return (x + m - 1) // m * m


def _pick_row_tile(h, wp, c, rout, in_bytes, out_bytes, w_vmem_bytes, budget_bytes):
    """Largest output-row tile R whose pipelined blocks fit the VMEM budget."""
    best = 1
    for r in range(1, h + 1):
        lt = (r + 2) * wp + 2
        need = 2 * c * _round_up(lt, 128) * in_bytes            # input tile, double-buffered
        need += 2 * rout * _round_up(r * wp, 128) * out_bytes   # output tile, double-buffered
        need += rout * _round_up(r * wp, 128) * 4               # f32 accumulator
        need += w_vmem_bytes                                    # single-buffered weights+bias
        if need <= budget_bytes:
            best = r
    return best


# ---------------------------------------------------------------------------
# Pallas kernel: 9 accumulated shifted matmuls over a flat, halo-inclusive tile.
# ---------------------------------------------------------------------------
def _make_kernel(wp, n_cols):
    def kernel(x_ref, w_ref, b_ref, o_ref):
        # x_ref: (1, 1, C, Lt) ; w_ref: (9, Rout, C) ; b_ref: (Rout, 1) ; o_ref: (1, 1, Rout, n_cols)
        acc = None
        for sh in range(3):
            for sw in range(3):
                t = sh * 3 + sw
                off = sh * wp + sw                            # static lane offset of this tap
                rhs = x_ref[0, 0, :, off:off + n_cols]        # (C, n_cols)
                part = jnp.dot(w_ref[t], rhs, preferred_element_type=jnp.float32)
                acc = part if acc is None else acc + part
        o_ref[0, 0] = (acc + b_ref[...]).astype(o_ref.dtype)
    return kernel


def decoder_apply(x, w_taps, b_full, *, operand_dtype=None, row_tile=None,
                  vmem_budget_bytes=24 * 1024 * 1024, vmem_limit_bytes=48 * 1024 * 1024):
    """Apply the composed decoder.  x: (B, Cin, H, W) -> (B, out_nc, 8H, 8W)."""
    orig_dtype = x.dtype
    B, cin, H, W = x.shape
    C = cin + 1
    n_taps, rout, c_w = w_taps.shape
    assert n_taps == 9 and c_w == C and rout % 64 == 0
    O = rout // 64
    wp = W + 2

    op_dtype = jnp.dtype(operand_dtype) if operand_dtype is not None else jnp.dtype(orig_dtype)
    in_bytes = op_dtype.itemsize
    out_bytes = jnp.dtype(orig_dtype).itemsize
    w_vmem = 9 * rout * _round_up(C, 128) * in_bytes + rout * 4 * 128

    R = row_tile or _pick_row_tile(H, wp, C, rout, in_bytes, out_bytes, w_vmem, vmem_budget_bytes)
    R = max(1, min(int(R), H))
    n_tiles = int(pl.cdiv(H, R))          # ragged tail handled by zero-padded rows + final crop
    lt = (R + 2) * wp + 2                 # +2 flat guard lanes for the (sh=2, sw=2) tap slice
    n_cols = R * wp

    # Ones channel carries the composed biases; ONE zero pad supplies the SAME-pad halo,
    # the extra bottom rows for the ragged last tile, and the flat guard.
    xa = jnp.concatenate([x, jnp.ones((B, 1, H, W), x.dtype)], axis=1).astype(op_dtype)
    pad_bottom = n_tiles * R + 2 - H      # >= 2
    xa = jnp.pad(xa, ((0, 0), (0, 0), (1, pad_bottom), (1, 1)))
    hp_rows = H + 1 + pad_bottom          # = n_tiles*R + 3
    xa_flat = xa.reshape(B, C, hp_rows * wp)
    # Flat, halo-inclusive row tiles (static slices -> cheap XLA copies, no gather).
    x_tiles = jnp.stack(
        [xa_flat[:, :, t * R * wp: t * R * wp + lt] for t in range(n_tiles)], axis=1)

    w_in = w_taps.astype(op_dtype)
    b_in = b_full.astype(jnp.float32)

    out = pl.pallas_call(
        _make_kernel(wp, n_cols),
        out_shape=jax.ShapeDtypeStruct((B, n_tiles, rout, n_cols), orig_dtype),
        grid_spec=pltpu.PrefetchScalarGridSpec(
            num_scalar_prefetch=0,
            grid=(B, n_tiles),
            in_specs=[
                pl.BlockSpec((1, 1, C, lt), lambda b, t: (b, t, 0, 0)),
                pl.BlockSpec((9, rout, C), lambda b, t: (0, 0, 0),
                             pipeline_mode=pl.Buffered(1)),      # constant block: 1 buffer
                pl.BlockSpec((rout, 1), lambda b, t: (0, 0),
                             pipeline_mode=pl.Buffered(1)),
            ],
            out_specs=pl.BlockSpec((1, 1, rout, n_cols), lambda b, t: (b, t, 0, 0)),
        ),
        compiler_params=pltpu.CompilerParams(
            dimension_semantics=("parallel", "parallel"),
            vmem_limit_bytes=vmem_limit_bytes),
    )(x_tiles, w_in, b_in)

    # (B, n_tiles, O*64, R*wp) -> crop the 2 garbage cols / padded rows, 8x pixel shuffle.
    out = out.reshape(B, n_tiles, O, 8, 8, R, wp)[..., :W]
    out = jnp.transpose(out, (0, 2, 1, 5, 3, 6, 4))              # (B, O, t, l, dy, w, dx)
    out = out.reshape(B, O, n_tiles * R, 8, W, 8)[:, :, :H]
    return out.reshape(B, O, 8 * H, 8 * W)


def insensitivity_decoder_forward(x, params, *, operand_dtype=None, row_tile=None,
                                  vmem_budget_bytes=24 * 1024 * 1024,
                                  vmem_limit_bytes=48 * 1024 * 1024):
    # In production, compose once and reuse; composition cost is negligible vs. inference.
    w_taps, b_full = compose_decoder_params(params)
    return decoder_apply(x, w_taps, b_full, operand_dtype=operand_dtype, row_tile=row_tile,
                         vmem_budget_bytes=vmem_budget_bytes, vmem_limit_bytes=vmem_limit_bytes)


# ---------------------------------------------------------------------------
# Pure-JAX layer-by-layer reference (mirrors the PyTorch forward exactly).
# ---------------------------------------------------------------------------
def insensitivity_decoder_reference(x, params):
    def up(inp, w, bias):
        b, _, h, wd = inp.shape
        cout = w.shape[1]
        y = jnp.einsum("bchw,coij->bohiwj", inp, w, precision=lax.Precision.HIGHEST)
        y = y.reshape(b, cout, 2 * h, 2 * wd)
        return y + bias[None, :, None, None]

    x = up(x, params["up3_w"], params["up3_b"])
    x = up(x, params["up2_w"], params["up2_b"])
    x = up(x, params["up1_w"], params["up1_b"])
    y = lax.conv_general_dilated(
        x, params["tail_w"], window_strides=(1, 1), padding=((1, 1), (1, 1)),
        dimension_numbers=("NCHW", "OIHW", "NCHW"), precision=lax.Precision.HIGHEST)
    return y + params["tail_b"][None, :, None, None]


if __name__ == "__main__":
    key = jax.random.PRNGKey(0)
    ks = jax.random.split(key, 9)

    B = 2
    out_nc = 3
    nc = [8, 16, 32, 64]          # small stand-in for the default [64, 128, 256, 512]
    H = W = 4                     # coarse latent; output is 8x: 32 x 32

    x = jax.random.normal(ks[0], (B, nc[3], H, W), dtype=jnp.float32)
    params = {
        # ConvTranspose2d weight layout: (in_ch, out_ch, kH, kW)
        "up3_w": 0.1 * jax.random.normal(ks[1], (nc[3], nc[2], 2, 2), jnp.float32),
        "up3_b": 0.1 * jax.random.normal(ks[2], (nc[2],), jnp.float32),
        "up2_w": 0.1 * jax.random.normal(ks[3], (nc[2], nc[1], 2, 2), jnp.float32),
        "up2_b": 0.1 * jax.random.normal(ks[4], (nc[1],), jnp.float32),
        "up1_w": 0.1 * jax.random.normal(ks[5], (nc[1], nc[0], 2, 2), jnp.float32),
        "up1_b": 0.1 * jax.random.normal(ks[6], (nc[0],), jnp.float32),
        # Conv2d weight layout: (out_ch, in_ch, kH, kW)
        "tail_w": 0.1 * jax.random.normal(ks[7], (out_nc, nc[0], 3, 3), jnp.float32),
        "tail_b": 0.1 * jax.random.normal(ks[8], (out_nc,), jnp.float32),
    }

    ref = insensitivity_decoder_reference(x, params)

    # f32 operand path (default; v5e-friendly).
    fwd_f32 = jax.jit(insensitivity_decoder_forward)
    out = jax.block_until_ready(fwd_f32(x, params))
    assert out.shape == (B, out_nc, 8 * H, 8 * W), out.shape
    err = float(jnp.max(jnp.abs(out - ref)))
    assert jnp.allclose(out, ref, atol=5e-3, rtol=5e-3), ("f32 mismatch", err)

    # bf16 operand fast path (v6e/v7x): f32 accumulation, looser operand-rounding tolerance.
    fwd_bf16 = jax.jit(
        lambda xx, pp: insensitivity_decoder_forward(xx, pp, operand_dtype=jnp.bfloat16))
    out_bf = jax.block_until_ready(fwd_bf16(x, params))
    err_bf = float(jnp.max(jnp.abs(out_bf - ref)))
    assert jnp.allclose(out_bf, ref, atol=5e-2, rtol=5e-2), ("bf16 mismatch", err_bf)

    print("KERNEL_OK")
</pallas_src>

<mosaic_0001>
module attributes {stable_mosaic.version = 11 : i64} {
  func.func @kernel(%arg0: i32, %arg1: i32, %arg2: memref<1x1x65x38xf32, #tpu.memory_space<vmem>>, %arg3: memref<9x192x65xf32, #tpu.memory_space<vmem>>, %arg4: memref<192x1xf32, #tpu.memory_space<vmem>>, %arg5: memref<1x1x192x24xf32, #tpu.memory_space<vmem>>) attributes {dimension_semantics = [#tpu.dimension_semantics<parallel>, #tpu.dimension_semantics<parallel>], iteration_bounds = array<i64: 2, 1>, scalar_prefetch = 0 : i64, scratch_operands = 0 : i64, tpu.core_type = #tpu.core_type<tc>, window_params = [{transform_indices = @transform_0, window_bounds = array<i64: 1, 1, 65, 38>}, {pipeline_mode = #tpu.pipeline_mode<synchronous>, transform_indices = @transform_1, window_bounds = array<i64: 9, 192, 65>}, {pipeline_mode = #tpu.pipeline_mode<synchronous>, transform_indices = @transform_2, window_bounds = array<i64: 192, 1>}, {transform_indices = @transform_3, window_bounds = array<i64: 1, 1, 192, 24>}]} {
    %c0 = arith.constant 0 : index
    %c0_0 = arith.constant 0 : index
    %c0_1 = arith.constant 0 : index
    %c0_2 = arith.constant 0 : index
    %0 = vector.load %arg2[%c0, %c0_0, %c0_1, %c0_2] : memref<1x1x65x38xf32, #tpu.memory_space<vmem>>, vector<1x1x65x24xf32>
    %1 = vector.shape_cast %0 : vector<1x1x65x24xf32> to vector<65x24xf32>
    %c0_3 = arith.constant 0 : index
    %c0_4 = arith.constant 0 : index
    %c0_5 = arith.constant 0 : index
    %2 = vector.load %arg3[%c0_3, %c0_4, %c0_5] : memref<9x192x65xf32, #tpu.memory_space<vmem>>, vector<1x192x65xf32>
    %3 = vector.shape_cast %2 : vector<1x192x65xf32> to vector<192x65xf32>
    %cst = arith.constant dense<0.000000e+00> : vector<192x24xf32>
    %4 = tpu.matmul %3, %1, %cst {dimension_numbers = #tpu.dot_dimension_numbers<[1], [0], [0], [1], [0, 0, 1, 1], [], []>} : vector<192x65xf32>, vector<65x24xf32>, vector<192x24xf32> -> vector<192x24xf32>
    %c0_6 = arith.constant 0 : index
    %c0_7 = arith.constant 0 : index
    %c0_8 = arith.constant 0 : index
    %c1 = arith.constant 1 : index
    %5 = vector.load %arg2[%c0_6, %c0_7, %c0_8, %c1] : memref<1x1x65x38xf32, #tpu.memory_space<vmem>>, vector<1x1x65x24xf32>
    %6 = vector.shape_cast %5 : vector<1x1x65x24xf32> to vector<65x24xf32>
    %c1_9 = arith.constant 1 : index
    %c0_10 = arith.constant 0 : index
    %c0_11 = arith.constant 0 : index
    %7 = vector.load %arg3[%c1_9, %c0_10, %c0_11] : memref<9x192x65xf32, #tpu.memory_space<vmem>>, vector<1x192x65xf32>
    %8 = vector.shape_cast %7 : vector<1x192x65xf32> to vector<192x65xf32>
    %cst_12 = arith.constant dense<0.000000e+00> : vector<192x24xf32>
    %9 = tpu.matmul %8, %6, %cst_12 {dimension_numbers = #tpu.dot_dimension_numbers<[1], [0], [0], [1], [0, 0, 1, 1], [], []>} : vector<192x65xf32>, vector<65x24xf32>, vector<192x24xf32> -> vector<192x24xf32>
    %10 = arith.addf %4, %9 : vector<192x24xf32>
    %c0_13 = arith.constant 0 : index
    %c0_14 = arith.constant 0 : index
    %c0_15 = arith.constant 0 : index
    %c2 = arith.constant 2 : index
    %11 = vector.load %arg2[%c0_13, %c0_14, %c0_15, %c2] : memref<1x1x65x38xf32, #tpu.memory_space<vmem>>, vector<1x1x65x24xf32>
    %12 = vector.shape_cast %11 : vector<1x1x65x24xf32> to vector<65x24xf32>
    %c2_16 = arith.constant 2 : index
    %c0_17 = arith.constant 0 : index
    %c0_18 = arith.constant 0 : index
    %13 = vector.load %arg3[%c2_16, %c0_17, %c0_18] : memref<9x192x65xf32, #tpu.memory_space<vmem>>, vector<1x192x65xf32>
    %14 = vector.shape_cast %13 : vector<1x192x65xf32> to vector<192x65xf32>
    %cst_19 = arith.constant dense<0.000000e+00> : vector<192x24xf32>
    %15 = tpu.matmul %14, %12, %cst_19 {dimension_numbers = #tpu.dot_dimension_numbers<[1], [0], [0], [1], [0, 0, 1, 1], [], []>} : vector<192x65xf32>, vector<65x24xf32>, vector<192x24xf32> -> vector<192x24xf32>
    %16 = arith.addf %10, %15 : vector<192x24xf32>
    %c0_20 = arith.constant 0 : index
    %c0_21 = arith.constant 0 : index
    %c0_22 = arith.constant 0 : index
    %c6 = arith.constant 6 : index
    %17 = vector.load %arg2[%c0_20, %c0_21, %c0_22, %c6] : memref<1x1x65x38xf32, #tpu.memory_space<vmem>>, vector<1x1x65x24xf32>
    %18 = vector.shape_cast %17 : vector<1x1x65x24xf32> to vector<65x24xf32>
    %c3 = arith.constant 3 : index
    %c0_23 = arith.constant 0 : index
    %c0_24 = arith.constant 0 : index
    %19 = vector.load %arg3[%c3, %c0_23, %c0_24] : memref<9x192x65xf32, #tpu.memory_space<vmem>>, vector<1x192x65xf32>
    %20 = vector.shape_cast %19 : vector<1x192x65xf32> to vector<192x65xf32>
    %cst_25 = arith.constant dense<0.000000e+00> : vector<192x24xf32>
    %21 = tpu.matmul %20, %18, %cst_25 {dimension_numbers = #tpu.dot_dimension_numbers<[1], [0], [0], [1], [0, 0, 1, 1], [], []>} : vector<192x65xf32>, vector<65x24xf32>, vector<192x24xf32> -> vector<192x24xf32>
    %22 = arith.addf %16, %21 : vector<192x24xf32>
    %c0_26 = arith.constant 0 : index
    %c0_27 = arith.constant 0 : index
    %c0_28 = arith.constant 0 : index
    %c7 = arith.constant 7 : index
    %23 = vector.load %arg2[%c0_26, %c0_27, %c0_28, %c7] : memref<1x1x65x38xf32, #tpu.memory_space<vmem>>, vector<1x1x65x24xf32>
    %24 = vector.shape_cast %23 : vector<1x1x65x24xf32> to vector<65x24xf32>
    %c4 = arith.constant 4 : index
    %c0_29 = arith.constant 0 : index
    %c0_30 = arith.constant 0 : index
    %25 = vector.load %arg3[%c4, %c0_29, %c0_30] : memref<9x192x65xf32, #tpu.memory_space<vmem>>, vector<1x192x65xf32>
    %26 = vector.shape_cast %25 : vector<1x192x65xf32> to vector<192x65xf32>
    %cst_31 = arith.constant dense<0.000000e+00> : vector<192x24xf32>
    %27 = tpu.matmul %26, %24, %cst_31 {dimension_numbers = #tpu.dot_dimension_numbers<[1], [0], [0], [1], [0, 0, 1, 1], [], []>} : vector<192x65xf32>, vector<65x24xf32>, vector<192x24xf32> -> vector<192x24xf32>
    %28 = arith.addf %22, %27 : vector<192x24xf32>
    %c0_32 = arith.constant 0 : index
    %c0_33 = arith.constant 0 : index
    %c0_34 = arith.constant 0 : index
    %c8 = arith.constant 8 : index
    %29 = vector.load %arg2[%c0_32, %c0_33, %c0_34, %c8] : memref<1x1x65x38xf32, #tpu.memory_space<vmem>>, vector<1x1x65x24xf32>
    %30 = vector.shape_cast %29 : vector<1x1x65x24xf32> to vector<65x24xf32>
    %c5 = arith.constant 5 : index
    %c0_35 = arith.constant 0 : index
    %c0_36 = arith.constant 0 : index
    %31 = vector.load %arg3[%c5, %c0_35, %c0_36] : memref<9x192x65xf32, #tpu.memory_space<vmem>>, vector<1x192x65xf32>
    %32 = vector.shape_cast %31 : vector<1x192x65xf32> to vector<192x65xf32>
    %cst_37 = arith.constant dense<0.000000e+00> : vector<192x24xf32>
    %33 = tpu.matmul %32, %30, %cst_37 {dimension_numbers = #tpu.dot_dimension_numbers<[1], [0], [0], [1], [0, 0, 1, 1], [], []>} : vector<192x65xf32>, vector<65x24xf32>, vector<192x24xf32> -> vector<192x24xf32>
    %34 = arith.addf %28, %33 : vector<192x24xf32>
    %c0_38 = arith.constant 0 : index
    %c0_39 = arith.constant 0 : index
    %c0_40 = arith.constant 0 : index
    %c12 = arith.constant 12 : index
    %35 = vector.load %arg2[%c0_38, %c0_39, %c0_40, %c12] : memref<1x1x65x38xf32, #tpu.memory_space<vmem>>, vector<1x1x65x24xf32>
    %36 = vector.shape_cast %35 : vector<1x1x65x24xf32> to vector<65x24xf32>
    %c6_41 = arith.constant 6 : index
    %c0_42 = arith.constant 0 : index
    %c0_43 = arith.constant 0 : index
    %37 = vector.load %arg3[%c6_41, %c0_42, %c0_43] : memref<9x192x65xf32, #tpu.memory_space<vmem>>, vector<1x192x65xf32>
    %38 = vector.shape_cast %37 : vector<1x192x65xf32> to vector<192x65xf32>
    %cst_44 = arith.constant dense<0.000000e+00> : vector<192x24xf32>
    %39 = tpu.matmul %38, %36, %cst_44 {dimension_numbers = #tpu.dot_dimension_numbers<[1], [0], [0], [1], [0, 0, 1, 1], [], []>} : vector<192x65xf32>, vector<65x24xf32>, vector<192x24xf32> -> vector<192x24xf32>
    %40 = arith.addf %34, %39 : vector<192x24xf32>
    %c0_45 = arith.constant 0 : index
    %c0_46 = arith.constant 0 : index
    %c0_47 = arith.constant 0 : index
    %c13 = arith.constant 13 : index
    %41 = vector.load %arg2[%c0_45, %c0_46, %c0_47, %c13] : memref<1x1x65x38xf32, #tpu.memory_space<vmem>>, vector<1x1x65x24xf32>
    %42 = vector.shape_cast %41 : vector<1x1x65x24xf32> to vector<65x24xf32>
    %c7_48 = arith.constant 7 : index
    %c0_49 = arith.constant 0 : index
    %c0_50 = arith.constant 0 : index
    %43 = vector.load %arg3[%c7_48, %c0_49, %c0_50] : memref<9x192x65xf32, #tpu.memory_space<vmem>>, vector<1x192x65xf32>
    %44 = vector.shape_cast %43 : vector<1x192x65xf32> to vector<192x65xf32>
    %cst_51 = arith.constant dense<0.000000e+00> : vector<192x24xf32>
    %45 = tpu.matmul %44, %42, %cst_51 {dimension_numbers = #tpu.dot_dimension_numbers<[1], [0], [0], [1], [0, 0, 1, 1], [], []>} : vector<192x65xf32>, vector<65x24xf32>, vector<192x24xf32> -> vector<192x24xf32>
    %46 = arith.addf %40, %45 : vector<192x24xf32>
    %c0_52 = arith.constant 0 : index
    %c0_53 = arith.constant 0 : index
    %c0_54 = arith.constant 0 : index
    %c14 = arith.constant 14 : index
    %47 = vector.load %arg2[%c0_52, %c0_53, %c0_54, %c14] : memref<1x1x65x38xf32, #tpu.memory_space<vmem>>, vector<1x1x65x24xf32>
    %48 = vector.shape_cast %47 : vector<1x1x65x24xf32> to vector<65x24xf32>
    %c8_55 = arith.constant 8 : index
    %c0_56 = arith.constant 0 : index
    %c0_57 = arith.constant 0 : index
    %49 = vector.load %arg3[%c8_55, %c0_56, %c0_57] : memref<9x192x65xf32, #tpu.memory_space<vmem>>, vector<1x192x65xf32>
    %50 = vector.shape_cast %49 : vector<1x192x65xf32> to vector<192x65xf32>
    %cst_58 = arith.constant dense<0.000000e+00> : vector<192x24xf32>
    %51 = tpu.matmul %50, %48, %cst_58 {dimension_numbers = #tpu.dot_dimension_numbers<[1], [0], [0], [1], [0, 0, 1, 1], [], []>} : vector<192x65xf32>, vector<65x24xf32>, vector<192x24xf32> -> vector<192x24xf32>
    %52 = arith.addf %46, %51 : vector<192x24xf32>
    %c0_59 = arith.constant 0 : index
    %c0_60 = arith.constant 0 : index
    %53 = vector.load %arg4[%c0_59, %c0_60] : memref<192x1xf32, #tpu.memory_space<vmem>>, vector<192x1xf32>
    %54 = vector.broadcast %53 : vector<192x1xf32> to vector<192x24xf32>
    %55 = arith.addf %52, %54 : vector<192x24xf32>
    %c0_61 = arith.constant 0 : index
    %c0_62 = arith.constant 0 : index
    %c0_63 = arith.constant 0 : index
    %c0_64 = arith.constant 0 : index
    %56 = vector.load %arg5[%c0_61, %c0_62, %c0_63, %c0_64] : memref<1x1x192x24xf32, #tpu.memory_space<vmem>>, vector<1x1x192x24xf32>
    %57 = vector.shape_cast %56 : vector<1x1x192x24xf32> to vector<192x24xf32>
    %58 = vector.shape_cast %55 : vector<192x24xf32> to vector<1x1x192x24xf32>
    tpu.vector_store %arg5[%c0_61, %c0_62, %c0_63, %c0_64], %58 {strides = array<i32>} : memref<1x1x192x24xf32, #tpu.memory_space<vmem>>, vector<1x1x192x24xf32>,
    return
  }
  func.func @transform_0(%arg0: i32, %arg1: i32) -> (i32, i32, i32, i32) {
    %c0_i32 = arith.constant 0 : i32
    %c0_i32_0 = arith.constant 0 : i32
    %c0_i32_1 = arith.constant 0 : i32
    return %arg0, %arg1, %c0_i32, %c0_i32_0 : i32, i32, i32, i32
  }
  func.func @transform_1(%arg0: i32, %arg1: i32) -> (i32, i32, i32) {
    %c0_i32 = arith.constant 0 : i32
    %c0_i32_0 = arith.constant 0 : i32
    %c0_i32_1 = arith.constant 0 : i32
    %c0_i32_2 = arith.constant 0 : i32
    return %c0_i32, %c0_i32_0, %c0_i32_1 : i32, i32, i32
  }
  func.func @transform_2(%arg0: i32, %arg1: i32) -> (i32, i32) {
    %c0_i32 = arith.constant 0 : i32
    %c0_i32_0 = arith.constant 0 : i32
    %c0_i32_1 = arith.constant 0 : i32
    return %c0_i32, %c0_i32_0 : i32, i32
  }
  func.func @transform_3(%arg0: i32, %arg1: i32) -> (i32, i32, i32, i32) {
    %c0_i32 = arith.constant 0 : i32
    %c0_i32_0 = arith.constant 0 : i32
    %c0_i32_1 = arith.constant 0 : i32
    return %arg0, %arg1, %c0_i32, %c0_i32_0 : i32, i32, i32, i32
  }
}

</mosaic_0001>

<llo_original>
// kernel: insensitivity_decoder_forward.1
$region0: #{insensitivity_decoder_forward.1}
  #allocation0 [shape = 'u32[]', space=smem, size = 0x4, offset = 0x4, fixed_abs, tag = 'smem constant byte address 0x4 - core index']
  #allocation1 [shape = 'u32[72,128]{1,0:T(1,128)}', space=vmem, size = 0x9000, scoped, tag = 'internal scratch']
  %s0 = inlined_call_operand.vmem [shape: f32[2,1,65,38], index: 0, kind: input, shape index: {}]
  %s1 = inlined_call_operand.vmem [shape: f32[9,192,65], index: 1, kind: input, shape index: {}]
  %s2 = inlined_call_operand.vmem [shape: f32[192,1], index: 2, kind: input, shape index: {}]
  %s3 = inlined_call_operand.vmem [shape: f32[2,1,192,24], index: 3, kind: output, shape index: {}]
  %s4 = sld [smem:[#allocation0]]
  $region45: #{insensitivity_decoder_forward.1} parent=0
    _
  %s6 = ssub.s32 1, %s4
  %s7 = scalar_select 0, %s6, %s4
  loop: start=0, step=1, limit=4
  $region2: #{insensitivity_decoder_forward.1} parent=0 // loop_pre_header
    _
  $region3: #{insensitivity_decoder_forward.1} parent=0 // loop_header
    %s9 = sphi 0, %s13
    %p10 = scmp.ge.s32.totalorder %s9, 4
    %s16 = sphi 0, %s28
    %s17 = sphi 0, %s24
    %s18 = sphi 0, %s16
    %s19 = sphi 0, %s17
    %s20 = sphi 0, %s18
    %s21 = sphi 0, %s19
    %s33 = sphi 0, %s35
    %s36 = sphi 0, %s33
    %s37 = sphi 0, %s36
    %s53 = sphi 0, %s37
    %s57 = sphi 0, %s57
    %s59 = sphi 0, %s57
    %s60 = sphi 0, %s59
    %s74 = sphi 0, %s60
    %s78 = sphi 0, %s78
    %s80 = sphi 0, %s78
    %s81 = sphi 0, %s80
    %s95 = sphi 0, %s81
    %s103 = sphi 0, %s105
    %s106 = sphi 0, %s103
    %s107 = sphi 0, %s106
    %s123 = sphi 0, %s107
  $region4: #{insensitivity_decoder_forward.1} parent=0 // loop_header_branch
    %12 = sbr.rel (%p10) target = $region8
  $region5: #{insensitivity_decoder_forward.1} parent=0 // loop_body
    %s14 = ssub.s32 %s9, 1
    %s15 = ssub.s32 %s9, 2
    %s22 = sadd.s32 1, %s17
    %p23 = scmp.ge.s32.totalorder %s22, 1
    %s24 = scalar_select %p23, 0, %s22
    %s25 = sadd.s32 1, %s16
    %s26 = scalar_select %p23, %s25, %s16
    %p27 = scmp.ge.s32.totalorder %s26, 2
    %s28 = scalar_select %p27, 0, %s26
    %s29 = ssub.s32 %s16, %s28
    %s30 = ssub.s32 %s17, %s24
    %s31 = sor.u32 %s29, %s30
    %p32 = scmp.eq.s32.totalorder %s31, 0
    %s34 = sadd.s32 %s33, 1
    %s35 = scalar_select %p32, %s33, %s34
    %p38 = pneg %p32
    %p39 = scmp.eq.s32.totalorder %s9, 1
    %p40 = por %p38, %p39
    %p41 = scmp.ne.s32.totalorder %s33, %s36
    %p42 = scmp.eq.s32.totalorder %s9, 0
    %p43 = por %p41, %p42
    %p44 = scmp.ne.s32.totalorder %s33, %s36
    %p45 = scmp.eq.s32.totalorder %s14, 1
    %p46 = por %p44, %p45
    %p47 = scmp.ne.s32.totalorder %s36, %s37
    %p48 = scmp.eq.s32.totalorder %s14, 0
    %p49 = por %p47, %p48
    %p50 = scmp.ne.s32.totalorder %s36, %s37
    %p51 = scmp.eq.s32.totalorder %s15, 1
    %p52 = por %p50, %p51
    %p54 = scmp.ne.s32.totalorder %s37, %s53
    %p55 = scmp.eq.s32.totalorder %s15, 0
    %p56 = por %p54, %p55
    %s58 = sadd.s32 %s57, 1
    %p61 = scmp.eq.s32.totalorder %s9, 1
    %p62 = scmp.ne.s32.totalorder %s57, %s59
    %p63 = scmp.eq.s32.totalorder %s9, 0
    %p64 = por %p62, %p63
    %p65 = scmp.ne.s32.totalorder %s57, %s59
    %p66 = scmp.eq.s32.totalorder %s14, 1
    %p67 = por %p65, %p66
    %p68 = scmp.ne.s32.totalorder %s59, %s60
    %p69 = scmp.eq.s32.totalorder %s14, 0
    %p70 = por %p68, %p69
    %p71 = scmp.ne.s32.totalorder %s59, %s60
    %p72 = scmp.eq.s32.totalorder %s15, 1
    %p73 = por %p71, %p72
    %p75 = scmp.ne.s32.totalorder %s60, %s74
    %p76 = scmp.eq.s32.totalorder %s15, 0
    %p77 = por %p75, %p76
    %s79 = sadd.s32 %s78, 1
    %p82 = scmp.eq.s32.totalorder %s9, 1
    %p83 = scmp.ne.s32.totalorder %s78, %s80
    %p84 = scmp.eq.s32.totalorder %s9, 0
    %p85 = por %p83, %p84
    %p86 = scmp.ne.s32.totalorder %s78, %s80
    %p87 = scmp.eq.s32.totalorder %s14, 1
    %p88 = por %p86, %p87
    %p89 = scmp.ne.s32.totalorder %s80, %s81
    %p90 = scmp.eq.s32.totalorder %s14, 0
    %p91 = por %p89, %p90
    %p92 = scmp.ne.s32.totalorder %s80, %s81
    %p93 = scmp.eq.s32.totalorder %s15, 1
    %p94 = por %p92, %p93
    %p96 = scmp.ne.s32.totalorder %s81, %s95
    %p97 = scmp.eq.s32.totalorder %s15, 0
    %p98 = por %p96, %p97
    %s99 = ssub.s32 %s16, %s28
    %s100 = ssub.s32 %s17, %s24
    %s101 = sor.u32 %s99, %s100
    %p102 = scmp.eq.s32.totalorder %s101, 0
    %s104 = sadd.s32 %s103, 1
    %s105 = scalar_select %p102, %s103, %s104
    %p108 = pneg %p102
    %p109 = scmp.eq.s32.totalorder %s9, 1
    %p110 = por %p108, %p109
    %p111 = scmp.ne.s32.totalorder %s103, %s106
    %p112 = scmp.eq.s32.totalorder %s9, 0
    %p113 = por %p111, %p112
    %p114 = scmp.ne.s32.totalorder %s103, %s106
    %p115 = scmp.eq.s32.totalorder %s14, 1
    %p116 = por %p114, %p115
    %p117 = scmp.ne.s32.totalorder %s106, %s107
    %p118 = scmp.eq.s32.totalorder %s14, 0
    %p119 = por %p117, %p118
    %p120 = scmp.ne.s32.totalorder %s106, %s107
    %p121 = scmp.eq.s32.totalorder %s15, 1
    %p122 = por %p120, %p121
    %p124 = scmp.ne.s32.totalorder %s107, %s123
    %p125 = scmp.eq.s32.totalorder %s15, 0
    %p126 = por %p124, %p125
    %p127 = scmp.le.s32.totalorder 1, %s9
    %p128 = scmp.lt.s32.totalorder %s9, 3
    %p129 = pnand %p127, %p128
    %p130 = pneg %p129
    // Predicated region
    $region9: #{insensitivity_decoder_forward.1} parent=5 // pred_check
      _
    $region10: #{insensitivity_decoder_forward.1} parent=5 // pred_check_branch
      %132 = sbr.rel (%p129) target = $region12
    $region11: #{insensitivity_decoder_forward.1} parent=5 // pred_region
      %s133 = ssub.s32 %s9, 1
      // Predicated region
      $region13: #{insensitivity_decoder_forward.1} parent=11 // pred_check
        %p134 = pneg %p70
      $region14: #{insensitivity_decoder_forward.1} parent=11 // pred_check_branch
        %136 = sbr.rel (%p134) target = $region16
      $region15: #{insensitivity_decoder_forward.1} parent=11 // pred_region
        _
      $region16: #{insensitivity_decoder_forward.1} parent=11 // pred_fallthru
        _
      // Predicated region
      $region17: #{insensitivity_decoder_forward.1} parent=11 // pred_check
        %p137 = pneg %p91
      $region18: #{insensitivity_decoder_forward.1} parent=11 // pred_check_branch
        %139 = sbr.rel (%p137) target = $region20
      $region19: #{insensitivity_decoder_forward.1} parent=11 // pred_region
        _
      $region20: #{insensitivity_decoder_forward.1} parent=11 // pred_fallthru
        _
    $region12: #{insensitivity_decoder_forward.1} parent=5 // pred_fallthru
      _
    %p140 = scmp.lt.s32.totalorder %s9, 2
    // Predicated region
    $region21: #{insensitivity_decoder_forward.1} parent=5 // pred_check
      %p141 = pneg %p140
    $region22: #{insensitivity_decoder_forward.1} parent=5 // pred_check_branch
      %143 = sbr.rel (%p141) target = $region24
    $region23: #{insensitivity_decoder_forward.1} parent=5 // pred_region
      // Predicated region
      $region25: #{insensitivity_decoder_forward.1} parent=23 // pred_check
        %p144 = pneg %p43
      $region26: #{insensitivity_decoder_forward.1} parent=23 // pred_check_branch
        %146 = sbr.rel (%p144) target = $region28
      $region27: #{insensitivity_decoder_forward.1} parent=23 // pred_region
        %p147 = scmp.lt.s32.totalorder %s16, 1
        %s148 = scalar_select %p147, %s16, 1
        %p149 = scmp.lt.s32.totalorder %s17, 0
        %s150 = scalar_select %p149, %s17, 0
        %s151 = smul.addr %s150, 9
        %s152 = smul.addr %s148, 9
        %s153 = sadd.s32 %s151, %s152
        %s154 = smul.addr %s153, 8
        %s155 = scalar_lea.vmem %s0, %s154
      $region28: #{insensitivity_decoder_forward.1} parent=23 // pred_fallthru
        _
    $region24: #{insensitivity_decoder_forward.1} parent=5 // pred_fallthru
      _
    %p156 = scmp.le.s32.totalorder 1, %s9
    %p157 = scmp.lt.s32.totalorder %s9, 3
    %p158 = pnand %p156, %p157
    %p159 = pneg %p158
    // Predicated region
    $region29: #{insensitivity_decoder_forward.1} parent=5 // pred_check
      _
    $region30: #{insensitivity_decoder_forward.1} parent=5 // pred_check_branch
      %161 = sbr.rel (%p158) target = $region32
    $region31: #{insensitivity_decoder_forward.1} parent=5 // pred_region
      %s162 = ssub.s32 %s9, 1
      %p163 = scmp.lt.s32.totalorder %s18, 1
      %s164 = scalar_select %p163, %s18, 1
      %p165 = scmp.lt.s32.totalorder %s19, 0
      %s166 = scalar_select %p165, %s19, 0
      %s167 = smul.addr %s166, 9
      %s168 = smul.addr %s164, 9
      %s169 = sadd.s32 %s167, %s168
      %s170 = smul.addr %s169, 8
      %s171 = scalar_lea.vmem %s0, %s170
      %p172 = pneg %p49
      %p173 = pneg %p46
      %p174 = pneg %p70
      %p175 = pneg %p67
      %p176 = pneg %p91
      %p177 = pneg %p88
      %p178 = pneg %p119
      %p179 = pneg %p116
      %p180 = scmp.lt.s32.totalorder %s18, 1
      %s181 = scalar_select %p180, %s18, 1
      %p182 = scmp.lt.s32.totalorder %s19, 0
      %s183 = scalar_select %p182, %s19, 0
      %s184 = smul.addr %s183, 24
      %s185 = smul.addr %s181, 24
      %s186 = sadd.s32 %s184, %s185
      %s187 = smul.addr %s186, 8
      %s188 = scalar_lea.vmem %s3, %s187
      %p189 = scmp.lt.s32.totalorder %s18, 1
      %s190 = scalar_select %p189, %s18, 1
      %p191 = scmp.lt.s32.totalorder %s19, 0
      %s192 = scalar_select %p191, %s19, 0
      %s193 = smul.addr %s192, 9
      %s194 = smul.addr %s190, 9
      %s195 = sadd.s32 %s193, %s194
      %s196 = smul.addr %s195, 8
      %s197 = scalar_lea.vmem %s0, %s196
      %p198 = scmp.lt.s32.totalorder %s18, 1
      %s199 = scalar_select %p198, %s18, 1
      %p200 = scmp.lt.s32.totalorder %s19, 0
      %s201 = scalar_select %p200, %s19, 0
      %s202 = smul.addr %s201, 24
      %s203 = smul.addr %s199, 24
      %s204 = sadd.s32 %s202, %s203
      %s205 = smul.addr %s204, 8
      %s206 = scalar_lea.vmem %s3, %s205
      %v207 = vld [vmem:[%s197] sm:$0xff]
      %v208 = vld [vmem:[%s197 + $0x8] sm:$0xff]
      %v209 = vld [vmem:[%s197 + $0x10] sm:$0xff]
      %v210 = vld [vmem:[%s197 + $0x18] sm:$0xff]
      %v211 = vld [vmem:[%s197 + $0x20] sm:$0xff]
      %v212 = vld [vmem:[%s197 + $0x28] sm:$0xff]
      %v213 = vld [vmem:[%s197 + $0x30] sm:$0xff]
      %v214 = vld [vmem:[%s197 + $0x38] sm:$0xff]
      %v215 = vld [vmem:[%s197 + $0x40] sm:$0x1]
      %v216 = vld [vmem:[%s1] sm:$0xff]
      %v217 = vld [vmem:[%s1 + $0x8] sm:$0xff]
      %v218 = vld [vmem:[%s1 + $0x10] sm:$0xff]
      %v219 = vld [vmem:[%s1 + $0x18] sm:$0xff]
      %v220 = vld [vmem:[%s1 + $0x20] sm:$0xff]
      %v221 = vld [vmem:[%s1 + $0x28] sm:$0xff]
      %v222 = vld [vmem:[%s1 + $0x30] sm:$0xff]
      %v223 = vld [vmem:[%s1 + $0x38] sm:$0xff]
      %v224 = vld [vmem:[%s1 + $0x40] sm:$0xff]
      %v225 = vld [vmem:[%s1 + $0x48] sm:$0xff]
      %v226 = vld [vmem:[%s1 + $0x50] sm:$0xff]
      %v227 = vld [vmem:[%s1 + $0x58] sm:$0xff]
      %v228 = vld [vmem:[%s1 + $0x60] sm:$0xff]
      %v229 = vld [vmem:[%s1 + $0x68] sm:$0xff]
      %v230 = vld [vmem:[%s1 + $0x70] sm:$0xff]
      %v231 = vld [vmem:[%s1 + $0x78] sm:$0xff]
      %v232 = vld [vmem:[%s1 + $0x80] sm:$0xff]
      %v233 = vld [vmem:[%s1 + $0x88] sm:$0xff]
      %v234 = vld [vmem:[%s1 + $0x90] sm:$0xff]
      %v235 = vld [vmem:[%s1 + $0x98] sm:$0xff]
      %v236 = vld [vmem:[%s1 + $0xa0] sm:$0xff]
      %v237 = vld [vmem:[%s1 + $0xa8] sm:$0xff]
      %v238 = vld [vmem:[%s1 + $0xb0] sm:$0xff]
      %v239 = vld [vmem:[%s1 + $0xb8] sm:$0xff]
      %s240 = scalar_lea.vmem %s1, 192
      %v241 = vld [vmem:[%s240] sm:$0xff]
      %v242 = vld [vmem:[%s240 + $0x8] sm:$0xff]
      %v243 = vld [vmem:[%s240 + $0x10] sm:$0xff]
      %v244 = vld [vmem:[%s240 + $0x18] sm:$0xff]
      %v245 = vld [vmem:[%s240 + $0x20] sm:$0xff]
      %v246 = vld [vmem:[%s240 + $0x28] sm:$0xff]
      %v247 = vld [vmem:[%s240 + $0x30] sm:$0xff]
      %v248 = vld [vmem:[%s240 + $0x38] sm:$0xff]
      %v249 = vld [vmem:[%s240 + $0x40] sm:$0xff]
      %v250 = vld [vmem:[%s240 + $0x48] sm:$0xff]
      %v251 = vld [vmem:[%s240 + $0x50] sm:$0xff]
      %v252 = vld [vmem:[%s240 + $0x58] sm:$0xff]
      %v253 = vld [vmem:[%s240 + $0x60] sm:$0xff]
      %v254 = vld [vmem:[%s240 + $0x68] sm:$0xff]
      %v255 = vld [vmem:[%s240 + $0x70] sm:$0xff]
      %v256 = vld [vmem:[%s240 + $0x78] sm:$0xff]
      %v257 = vld [vmem:[%s240 + $0x80] sm:$0xff]
      %v258 = vld [vmem:[%s240 + $0x88] sm:$0xff]
      %v259 = vld [vmem:[%s240 + $0x90] sm:$0xff]
      %v260 = vld [vmem:[%s240 + $0x98] sm:$0xff]
      %v261 = vld [vmem:[%s240 + $0xa0] sm:$0xff]
      %v262 = vld [vmem:[%s240 + $0xa8] sm:$0xff]
      %v263 = vld [vmem:[%s240 + $0xb0] sm:$0xff]
      %v264 = vld [vmem:[%s240 + $0xb8] sm:$0xff]
      %274 = vrot.lane.b32.xlu0 %v207, 127
      %v275 = vpop.permute.xlu0 %274
      %276 = vrot.lane.b32.xlu0 %v208, 127
      %v277 = vpop.permute.xlu0 %276
      %278 = vrot.lane.b32.xlu0 %v209, 127
      %v279 = vpop.permute.xlu0 %278
      %280 = vrot.lane.b32.xlu0 %v210, 127
      %v281 = vpop.permute.xlu0 %280
      %282 = vrot.lane.b32.xlu0 %v211, 127
      %v283 = vpop.permute.xlu0 %282
      %284 = vrot.lane.b32.xlu0 %v212, 127
      %v285 = vpop.permute.xlu0 %284
      %286 = vrot.lane.b32.xlu0 %v213, 127
      %v287 = vpop.permute.xlu0 %286
      %288 = vrot.lane.b32.xlu0 %v214, 127
      %v289 = vpop.permute.xlu0 %288
      %290 = vrot.lane.b32.xlu0 %v215, 127
      %v291 = vpop.permute.xlu0 %290
      %vm300 = vcmask 531456
      %v302 = vsel %vm300, %v241, 0
      %v305 = vsel %vm300, %v242, 0
      %v308 = vsel %vm300, %v243, 0
      %v311 = vsel %vm300, %v244, 0
      %v314 = vsel %vm300, %v245, 0
      %v317 = vsel %vm300, %v246, 0
      %v320 = vsel %vm300, %v247, 0
      %v323 = vsel %vm300, %v248, 0
      %v326 = vsel %vm300, %v249, 0
      %v329 = vsel %vm300, %v250, 0
      %v332 = vsel %vm300, %v251, 0
      %v335 = vsel %vm300, %v252, 0
      %v338 = vsel %vm300, %v253, 0
      %v341 = vsel %vm300, %v254, 0
      %v344 = vsel %vm300, %v255, 0
      %v347 = vsel %vm300, %v256, 0
      %v350 = vsel %vm300, %v257, 0
      %v353 = vsel %vm300, %v258, 0
      %v356 = vsel %vm300, %v259, 0
      %v359 = vsel %vm300, %v260, 0
      %v362 = vsel %vm300, %v261, 0
      %v365 = vsel %vm300, %v262, 0
      %v368 = vsel %vm300, %v263, 0
      %v371 = vsel %vm300, %v264, 0
      %vm373 = vcmask 1040384
      %v374 = vsel %vm373, %v291, 0
      %376 = vmatpush.msra.mxu0 0.0
      %377 = vmatpush.msra.mxu0 0.0
      %378 = vmatpush.msra.mxu0 0.0
      %379 = vmatpush.msra.mxu0 0.0
      %380 = vmatpush.msra.mxu0 0.0
      %381 = vmatpush.msra.mxu0 0.0
      %382 = vmatpush.msra.mxu0 0.0
      %383 = vmatpush.msra.mxu0 %v374
      %384 = vmatpush.msra.mxu0 %v289
      %385 = vmatpush.msra.mxu0 %v287
      %386 = vmatpush.msra.mxu0 %v285
      %387 = vmatpush.msra.mxu0 %v283
      %388 = vmatpush.msra.mxu0 %v281
      %389 = vmatpush.msra.mxu0 %v279
      %390 = vmatpush.msra.mxu0 %v277
      %391 = vmatpush.msra.mxu0 %v275
      %392 = vmatmul.f32.gmra.mxu0 %v302
      %v393 = vpop.f32.mrf.mxu0
      %v394 = vadd.f32 0.0, %v393
      %395 = vmatmul.f32.gmra.mxu0 %v305
      %v396 = vpop.f32.mrf.mxu0
      %v397 = vadd.f32 0.0, %v396
      %398 = vmatmul.f32.gmra.mxu0 %v308
      %v399 = vpop.f32.mrf.mxu0
      %v400 = vadd.f32 0.0, %v399
      %401 = vmatmul.f32.gmra.mxu0 %v311
      %v402 = vpop.f32.mrf.mxu0
      %v403 = vadd.f32 0.0, %v402
      %404 = vmatmul.f32.gmra.mxu0 %v314
      %v405 = vpop.f32.mrf.mxu0
      %v406 = vadd.f32 0.0, %v405
      %407 = vmatmul.f32.gmra.mxu0 %v317
      %v408 = vpop.f32.mrf.mxu0
      %v409 = vadd.f32 0.0, %v408
      %410 = vmatmul.f32.gmra.mxu0 %v320
      %v411 = vpop.f32.mrf.mxu0
      %v412 = vadd.f32 0.0, %v411
      %413 = vmatmul.f32.gmra.mxu0 %v323
      %v414 = vpop.f32.mrf.mxu0
      %v415 = vadd.f32 0.0, %v414
      %416 = vmatmul.f32.gmra.mxu0 %v326
      %v417 = vpop.f32.mrf.mxu0
      %v418 = vadd.f32 0.0, %v417
      %419 = vmatmul.f32.gmra.mxu0 %v329
      %v420 = vpop.f32.mrf.mxu0
      %v421 = vadd.f32 0.0, %v420
      %422 = vmatmul.f32.gmra.mxu0 %v332
      %v423 = vpop.f32.mrf.mxu0
      %v424 = vadd.f32 0.0, %v423
      %425 = vmatmul.f32.gmra.mxu0 %v335
      %v426 = vpop.f32.mrf.mxu0
      %v427 = vadd.f32 0.0, %v426
      %428 = vmatmul.f32.gmra.mxu0 %v338
      %v429 = vpop.f32.mrf.mxu0
      %v430 = vadd.f32 0.0, %v429
      %431 = vmatmul.f32.gmra.mxu0 %v341
      %v432 = vpop.f32.mrf.mxu0
      %v433 = vadd.f32 0.0, %v432
      %434 = vmatmul.f32.gmra.mxu0 %v344
      %v435 = vpop.f32.mrf.mxu0
      %v436 = vadd.f32 0.0, %v435
      %437 = vmatmul.f32.gmra.mxu0 %v347
      %v438 = vpop.f32.mrf.mxu0
      %v439 = vadd.f32 0.0, %v438
      %440 = vmatmul.f32.gmra.mxu0 %v350
      %v441 = vpop.f32.mrf.mxu0
      %v442 = vadd.f32 0.0, %v441
      %443 = vmatmul.f32.gmra.mxu0 %v353
      %v444 = vpop.f32.mrf.mxu0
      %v445 = vadd.f32 0.0, %v444
      %446 = vmatmul.f32.gmra.mxu0 %v356
      %v447 = vpop.f32.mrf.mxu0
      %v448 = vadd.f32 0.0, %v447
      %449 = vmatmul.f32.gmra.mxu0 %v359
      %v450 = vpop.f32.mrf.mxu0
      %v451 = vadd.f32 0.0, %v450
      %452 = vmatmul.f32.gmra.mxu0 %v362
      %v453 = vpop.f32.mrf.mxu0
      %v454 = vadd.f32 0.0, %v453
      %455 = vmatmul.f32.gmra.mxu0 %v365
      %v456 = vpop.f32.mrf.mxu0
      %v457 = vadd.f32 0.0, %v456
      %458 = vmatmul.f32.gmra.mxu0 %v368
      %v459 = vpop.f32.mrf.mxu0
      %v460 = vadd.f32 0.0, %v459
      %461 = vmatmul.f32.gmra.mxu0 %v371
      %v462 = vpop.f32.mrf.mxu0
      %v463 = vadd.f32 0.0, %v462
      %464 = vdwg.mxu0
      %v466 = vsel %vm300, %v216, 0
      %v469 = vsel %vm300, %v217, 0
      %v472 = vsel %vm300, %v218, 0
      %v475 = vsel %vm300, %v219, 0
      %v478 = vsel %vm300, %v220, 0
      %v481 = vsel %vm300, %v221, 0
      %v484 = vsel %vm300, %v222, 0
      %v487 = vsel %vm300, %v223, 0
      %v490 = vsel %vm300, %v224, 0
      %v493 = vsel %vm300, %v225, 0
      %v496 = vsel %vm300, %v226, 0
      %v499 = vsel %vm300, %v227, 0
      %v502 = vsel %vm300, %v228, 0
      %v505 = vsel %vm300, %v229, 0
      %v508 = vsel %vm300, %v230, 0
      %v511 = vsel %vm300, %v231, 0
      %v514 = vsel %vm300, %v232, 0
      %v517 = vsel %vm300, %v233, 0
      %v520 = vsel %vm300, %v234, 0
      %v523 = vsel %vm300, %v235, 0
      %v526 = vsel %vm300, %v236, 0
      %v529 = vsel %vm300, %v237, 0
      %v532 = vsel %vm300, %v238, 0
      %v535 = vsel %vm300, %v239, 0
      %v537 = vsel %vm373, %v215, 0
      %539 = vmatpush.msra.mxu0 0.0
      %540 = vmatpush.msra.mxu0 0.0
      %541 = vmatpush.msra.mxu0 0.0
      %542 = vmatpush.msra.mxu0 0.0
      %543 = vmatpush.msra.mxu0 0.0
      %544 = vmatpush.msra.mxu0 0.0
      %545 = vmatpush.msra.mxu0 0.0
      %546 = vmatpush.msra.mxu0 %v537
      %547 = vmatpush.msra.mxu0 %v214
      %548 = vmatpush.msra.mxu0 %v213
      %549 = vmatpush.msra.mxu0 %v212
      %550 = vmatpush.msra.mxu0 %v211
      %551 = vmatpush.msra.mxu0 %v210
      %552 = vmatpush.msra.mxu0 %v209
      %553 = vmatpush.msra.mxu0 %v208
      %554 = vmatpush.msra.mxu0 %v207
      %555 = vmatmul.f32.gmra.mxu0 %v466
      %v556 = vpop.f32.mrf.mxu0
      %v557 = vadd.f32 %v394, %v556
      %558 = vmatmul.f32.gmra.mxu0 %v469
      %v559 = vpop.f32.mrf.mxu0
      %v560 = vadd.f32 %v397, %v559
      %561 = vmatmul.f32.gmra.mxu0 %v472
      %v562 = vpop.f32.mrf.mxu0
      %v563 = vadd.f32 %v400, %v562
      %564 = vmatmul.f32.gmra.mxu0 %v475
      %v565 = vpop.f32.mrf.mxu0
      %v566 = vadd.f32 %v403, %v565
      %567 = vmatmul.f32.gmra.mxu0 %v478
      %v568 = vpop.f32.mrf.mxu0
      %v569 = vadd.f32 %v406, %v568
      %570 = vmatmul.f32.gmra.mxu0 %v481
      %v571 = vpop.f32.mrf.mxu0
      %v572 = vadd.f32 %v409, %v571
      %573 = vmatmul.f32.gmra.mxu0 %v484
      %v574 = vpop.f32.mrf.mxu0
      %v575 = vadd.f32 %v412, %v574
      %576 = vmatmul.f32.gmra.mxu0 %v487
      %v577 = vpop.f32.mrf.mxu0
      %v578 = vadd.f32 %v415, %v577
      %579 = vmatmul.f32.gmra.mxu0 %v490
      %v580 = vpop.f32.mrf.mxu0
      %v581 = vadd.f32 %v418, %v580
      %582 = vmatmul.f32.gmra.mxu0 %v493
      %v583 = vpop.f32.mrf.mxu0
      %v584 = vadd.f32 %v421, %v583
      %585 = vmatmul.f32.gmra.mxu0 %v496
      %v586 = vpop.f32.mrf.mxu0
      %v587 = vadd.f32 %v424, %v586
      %588 = vmatmul.f32.gmra.mxu0 %v499
      %v589 = vpop.f32.mrf.mxu0
      %v590 = vadd.f32 %v427, %v589
      %591 = vmatmul.f32.gmra.mxu0 %v502
      %v592 = vpop.f32.mrf.mxu0
      %v593 = vadd.f32 %v430, %v592
      %594 = vmatmul.f32.gmra.mxu0 %v505
      %v595 = vpop.f32.mrf.mxu0
      %v596 = vadd.f32 %v433, %v595
      %597 = vmatmul.f32.gmra.mxu0 %v508
      %v598 = vpop.f32.mrf.mxu0
      %v599 = vadd.f32 %v436, %v598
      %600 = vmatmul.f32.gmra.mxu0 %v511
      %v601 = vpop.f32.mrf.mxu0
      %v602 = vadd.f32 %v439, %v601
      %603 = vmatmul.f32.gmra.mxu0 %v514
      %v604 = vpop.f32.mrf.mxu0
      %v605 = vadd.f32 %v442, %v604
      %606 = vmatmul.f32.gmra.mxu0 %v517
      %v607 = vpop.f32.mrf.mxu0
      %v608 = vadd.f32 %v445, %v607
      %609 = vmatmul.f32.gmra.mxu0 %v520
      %v610 = vpop.f32.mrf.mxu0
      %v611 = vadd.f32 %v448, %v610
      %612 = vmatmul.f32.gmra.mxu0 %v523
      %v613 = vpop.f32.mrf.mxu0
      %v614 = vadd.f32 %v451, %v613
      %615 = vmatmul.f32.gmra.mxu0 %v526
      %v616 = vpop.f32.mrf.mxu0
      %v617 = vadd.f32 %v454, %v616
      %618 = vmatmul.f32.gmra.mxu0 %v529
      %v619 = vpop.f32.mrf.mxu0
      %v620 = vadd.f32 %v457, %v619
      %621 = vmatmul.f32.gmra.mxu0 %v532
      %v622 = vpop.f32.mrf.mxu0
      %v623 = vadd.f32 %v460, %v622
      %624 = vmatmul.f32.gmra.mxu0 %v535
      %v625 = vpop.f32.mrf.mxu0
      %v626 = vadd.f32 %v463, %v625
      %627 = vdwg.mxu0
      %s628 = scalar_lea.vmem %s1, 384
      %v629 = vld [vmem:[%s628] sm:$0xff]
      %v630 = vld [vmem:[%s628 + $0x8] sm:$0xff]
      %v631 = vld [vmem:[%s628 + $0x10] sm:$0xff]
      %v632 = vld [vmem:[%s628 + $0x18] sm:$0xff]
      %v633 = vld [vmem:[%s628 + $0x20] sm:$0xff]
      %v634 = vld [vmem:[%s628 + $0x28] sm:$0xff]
      %v635 = vld [vmem:[%s628 + $0x30] sm:$0xff]
      %v636 = vld [vmem:[%s628 + $0x38] sm:$0xff]
      %v637 = vld [vmem:[%s628 + $0x40] sm:$0xff]
      %v638 = vld [vmem:[%s628 + $0x48] sm:$0xff]
      %v639 = vld [vmem:[%s628 + $0x50] sm:$0xff]
      %v640 = vld [vmem:[%s628 + $0x58] sm:$0xff]
      %v641 = vld [vmem:[%s628 + $0x60] sm:$0xff]
      %v642 = vld [vmem:[%s628 + $0x68] sm:$0xff]
      %v643 = vld [vmem:[%s628 + $0x70] sm:$0xff]
      %v644 = vld [vmem:[%s628 + $0x78] sm:$0xff]
      %v645 = vld [vmem:[%s628 + $0x80] sm:$0xff]
      %v646 = vld [vmem:[%s628 + $0x88] sm:$0xff]
      %v647 = vld [vmem:[%s628 + $0x90] sm:$0xff]
      %v648 = vld [vmem:[%s628 + $0x98] sm:$0xff]
      %v649 = vld [vmem:[%s628 + $0xa0] sm:$0xff]
      %v650 = vld [vmem:[%s628 + $0xa8] sm:$0xff]
      %v651 = vld [vmem:[%s628 + $0xb0] sm:$0xff]
      %v652 = vld [vmem:[%s628 + $0xb8] sm:$0xff]
      %653 = vrot.lane.b32.xlu0 %v207, 126
      %v654 = vpop.permute.xlu0 %653
      %655 = vrot.lane.b32.xlu0 %v208, 126
      %v656 = vpop.permute.xlu0 %655
      %657 = vrot.lane.b32.xlu0 %v209, 126
      %v658 = vpop.permute.xlu0 %657
      %659 = vrot.lane.b32.xlu0 %v210, 126
      %v660 = vpop.permute.xlu0 %659
      %661 = vrot.lane.b32.xlu0 %v211, 126
      %v662 = vpop.permute.xlu0 %661
      %663 = vrot.lane.b32.xlu0 %v212, 126
      %v664 = vpop.permute.xlu0 %663
      %665 = vrot.lane.b32.xlu0 %v213, 126
      %v666 = vpop.permute.xlu0 %665
      %667 = vrot.lane.b32.xlu0 %v214, 126
      %v668 = vpop.permute.xlu0 %667
      %669 = vrot.lane.b32.xlu0 %v215, 126
      %v670 = vpop.permute.xlu0 %669
      %v680 = vsel %vm300, %v629, 0
      %v683 = vsel %vm300, %v630, 0
      %v686 = vsel %vm300, %v631, 0
      %v689 = vsel %vm300, %v632, 0
      %v692 = vsel %vm300, %v633, 0
      %v695 = vsel %vm300, %v634, 0
      %v698 = vsel %vm300, %v635, 0
      %v701 = vsel %vm300, %v636, 0
      %v704 = vsel %vm300, %v637, 0
      %v707 = vsel %vm300, %v638, 0
      %v710 = vsel %vm300, %v639, 0
      %v713 = vsel %vm300, %v640, 0
      %v716 = vsel %vm300, %v641, 0
      %v719 = vsel %vm300, %v642, 0
      %v722 = vsel %vm300, %v643, 0
      %v725 = vsel %vm300, %v644, 0
      %v728 = vsel %vm300, %v645, 0
      %v731 = vsel %vm300, %v646, 0
      %v734 = vsel %vm300, %v647, 0
      %v737 = vsel %vm300, %v648, 0
      %v740 = vsel %vm300, %v649, 0
      %v743 = vsel %vm300, %v650, 0
      %v746 = vsel %vm300, %v651, 0
      %v749 = vsel %vm300, %v652, 0
      %v751 = vsel %vm373, %v670, 0
      %753 = vmatpush.msra.mxu0 0.0
      %754 = vmatpush.msra.mxu0 0.0
      %755 = vmatpush.msra.mxu0 0.0
      %756 = vmatpush.msra.mxu0 0.0
      %757 = vmatpush.msra.mxu0 0.0
      %758 = vmatpush.msra.mxu0 0.0
      %759 = vmatpush.msra.mxu0 0.0
      %760 = vmatpush.msra.mxu0 %v751
      %761 = vmatpush.msra.mxu0 %v668
      %762 = vmatpush.msra.mxu0 %v666
      %763 = vmatpush.msra.mxu0 %v664
      %764 = vmatpush.msra.mxu0 %v662
      %765 = vmatpush.msra.mxu0 %v660
      %766 = vmatpush.msra.mxu0 %v658
      %767 = vmatpush.msra.mxu0 %v656
      %768 = vmatpush.msra.mxu0 %v654
      %769 = vmatmul.f32.gmra.mxu0 %v680
      %v770 = vpop.f32.mrf.mxu0
      %v771 = vadd.f32 0.0, %v770
      %772 = vmatmul.f32.gmra.mxu0 %v683
      %v773 = vpop.f32.mrf.mxu0
      %v774 = vadd.f32 0.0, %v773
      %775 = vmatmul.f32.gmra.mxu0 %v686
      %v776 = vpop.f32.mrf.mxu0
      %v777 = vadd.f32 0.0, %v776
      %778 = vmatmul.f32.gmra.mxu0 %v689
      %v779 = vpop.f32.mrf.mxu0
      %v780 = vadd.f32 0.0, %v779
      %781 = vmatmul.f32.gmra.mxu0 %v692
      %v782 = vpop.f32.mrf.mxu0
      %v783 = vadd.f32 0.0, %v782
      %784 = vmatmul.f32.gmra.mxu0 %v695
      %v785 = vpop.f32.mrf.mxu0
      %v786 = vadd.f32 0.0, %v785
      %787 = vmatmul.f32.gmra.mxu0 %v698
      %v788 = vpop.f32.mrf.mxu0
      %v789 = vadd.f32 0.0, %v788
      %790 = vmatmul.f32.gmra.mxu0 %v701
      %v791 = vpop.f32.mrf.mxu0
      %v792 = vadd.f32 0.0, %v791
      %793 = vmatmul.f32.gmra.mxu0 %v704
      %v794 = vpop.f32.mrf.mxu0
      %v795 = vadd.f32 0.0, %v794
      %796 = vmatmul.f32.gmra.mxu0 %v707
      %v797 = vpop.f32.mrf.mxu0
      %v798 = vadd.f32 0.0, %v797
      %799 = vmatmul.f32.gmra.mxu0 %v710
      %v800 = vpop.f32.mrf.mxu0
      %v801 = vadd.f32 0.0, %v800
      %802 = vmatmul.f32.gmra.mxu0 %v713
      %v803 = vpop.f32.mrf.mxu0
      %v804 = vadd.f32 0.0, %v803
      %805 = vmatmul.f32.gmra.mxu0 %v716
      %v806 = vpop.f32.mrf.mxu0
      %v807 = vadd.f32 0.0, %v806
      %808 = vmatmul.f32.gmra.mxu0 %v719
      %v809 = vpop.f32.mrf.mxu0
      %v810 = vadd.f32 0.0, %v809
      %811 = vmatmul.f32.gmra.mxu0 %v722
      %v812 = vpop.f32.mrf.mxu0
      %v813 = vadd.f32 0.0, %v812
      %814 = vmatmul.f32.gmra.mxu0 %v725
      %v815 = vpop.f32.mrf.mxu0
      %v816 = vadd.f32 0.0, %v815
      %817 = vmatmul.f32.gmra.mxu0 %v728
      %v818 = vpop.f32.mrf.mxu0
      %v819 = vadd.f32 0.0, %v818
      %820 = vmatmul.f32.gmra.mxu0 %v731
      %v821 = vpop.f32.mrf.mxu0
      %v822 = vadd.f32 0.0, %v821
      %823 = vmatmul.f32.gmra.mxu0 %v734
      %v824 = vpop.f32.mrf.mxu0
      %v825 = vadd.f32 0.0, %v824
      %826 = vmatmul.f32.gmra.mxu0 %v737
      %v827 = vpop.f32.mrf.mxu0
      %v828 = vadd.f32 0.0, %v827
      %829 = vmatmul.f32.gmra.mxu0 %v740
      %v830 = vpop.f32.mrf.mxu0
      %v831 = vadd.f32 0.0, %v830
      %832 = vmatmul.f32.gmra.mxu0 %v743
      %v833 = vpop.f32.mrf.mxu0
      %v834 = vadd.f32 0.0, %v833
      %835 = vmatmul.f32.gmra.mxu0 %v746
      %v836 = vpop.f32.mrf.mxu0
      %v837 = vadd.f32 0.0, %v836
      %838 = vmatmul.f32.gmra.mxu0 %v749
      %v839 = vpop.f32.mrf.mxu0
      %v840 = vadd.f32 0.0, %v839
      %841 = vdwg.mxu0
      %v842 = vadd.f32 %v557, %v771
      %v843 = vadd.f32 %v560, %v774
      %v844 = vadd.f32 %v563, %v777
      %v845 = vadd.f32 %v566, %v780
      %v846 = vadd.f32 %v569, %v783
      %v847 = vadd.f32 %v572, %v786
      %v848 = vadd.f32 %v575, %v789
      %v849 = vadd.f32 %v578, %v792
      %v850 = vadd.f32 %v581, %v795
      %v851 = vadd.f32 %v584, %v798
      %v852 = vadd.f32 %v587, %v801
      %v853 = vadd.f32 %v590, %v804
      %v854 = vadd.f32 %v593, %v807
      %v855 = vadd.f32 %v596, %v810
      %v856 = vadd.f32 %v599, %v813
      %v857 = vadd.f32 %v602, %v816
      %v858 = vadd.f32 %v605, %v819
      %v859 = vadd.f32 %v608, %v822
      %v860 = vadd.f32 %v611, %v825
      %v861 = vadd.f32 %v614, %v828
      %v862 = vadd.f32 %v617, %v831
      %v863 = vadd.f32 %v620, %v834
      %v864 = vadd.f32 %v623, %v837
      %v865 = vadd.f32 %v626, %v840
      %s866 = scalar_lea.vmem %s1, 576
      %v867 = vld [vmem:[%s866] sm:$0xff]
      %v868 = vld [vmem:[%s866 + $0x8] sm:$0xff]
      %v869 = vld [vmem:[%s866 + $0x10] sm:$0xff]
      %v870 = vld [vmem:[%s866 + $0x18] sm:$0xff]
      %v871 = vld [vmem:[%s866 + $0x20] sm:$0xff]
      %v872 = vld [vmem:[%s866 + $0x28] sm:$0xff]
      %v873 = vld [vmem:[%s866 + $0x30] sm:$0xff]
      %v874 = vld [vmem:[%s866 + $0x38] sm:$0xff]
      %v875 = vld [vmem:[%s866 + $0x40] sm:$0xff]
      %v876 = vld [vmem:[%s866 + $0x48] sm:$0xff]
      %v877 = vld [vmem:[%s866 + $0x50] sm:$0xff]
      %v878 = vld [vmem:[%s866 + $0x58] sm:$0xff]
      %v879 = vld [vmem:[%s866 + $0x60] sm:$0xff]
      %v880 = vld [vmem:[%s866 + $0x68] sm:$0xff]
      %v881 = vld [vmem:[%s866 + $0x70] sm:$0xff]
      %v882 = vld [vmem:[%s866 + $0x78] sm:$0xff]
      %v883 = vld [vmem:[%s866 + $0x80] sm:$0xff]
      %v884 = vld [vmem:[%s866 + $0x88] sm:$0xff]
      %v885 = vld [vmem:[%s866 + $0x90] sm:$0xff]
      %v886 = vld [vmem:[%s866 + $0x98] sm:$0xff]
      %v887 = vld [vmem:[%s866 + $0xa0] sm:$0xff]
      %v888 = vld [vmem:[%s866 + $0xa8] sm:$0xff]
      %v889 = vld [vmem:[%s866 + $0xb0] sm:$0xff]
      %v890 = vld [vmem:[%s866 + $0xb8] sm:$0xff]
      %891 = vrot.lane.b32.xlu0 %v207, 122
      %v892 = vpop.permute.xlu0 %891
      %893 = vrot.lane.b32.xlu0 %v208, 122
      %v894 = vpop.permute.xlu0 %893
      %895 = vrot.lane.b32.xlu0 %v209, 122
      %v896 = vpop.permute.xlu0 %895
      %897 = vrot.lane.b32.xlu0 %v210, 122
      %v898 = vpop.permute.xlu0 %897
      %899 = vrot.lane.b32.xlu0 %v211, 122
      %v900 = vpop.permute.xlu0 %899
      %901 = vrot.lane.b32.xlu0 %v212, 122
      %v902 = vpop.permute.xlu0 %901
      %903 = vrot.lane.b32.xlu0 %v213, 122
      %v904 = vpop.permute.xlu0 %903
      %905 = vrot.lane.b32.xlu0 %v214, 122
      %v906 = vpop.permute.xlu0 %905
      %907 = vrot.lane.b32.xlu0 %v215, 122
      %v908 = vpop.permute.xlu0 %907
      %v918 = vsel %vm300, %v867, 0
      %v921 = vsel %vm300, %v868, 0
      %v924 = vsel %vm300, %v869, 0
      %v927 = vsel %vm300, %v870, 0
      %v930 = vsel %vm300, %v871, 0
      %v933 = vsel %vm300, %v872, 0
      %v936 = vsel %vm300, %v873, 0
      %v939 = vsel %vm300, %v874, 0
      %v942 = vsel %vm300, %v875, 0
      %v945 = vsel %vm300, %v876, 0
      %v948 = vsel %vm300, %v877, 0
      %v951 = vsel %vm300, %v878, 0
      %v954 = vsel %vm300, %v879, 0
      %v957 = vsel %vm300, %v880, 0
      %v960 = vsel %vm300, %v881, 0
      %v963 = vsel %vm300, %v882, 0
      %v966 = vsel %vm300, %v883, 0
      %v969 = vsel %vm300, %v884, 0
      %v972 = vsel %vm300, %v885, 0
      %v975 = vsel %vm300, %v886, 0
      %v978 = vsel %vm300, %v887, 0
      %v981 = vsel %vm300, %v888, 0
      %v984 = vsel %vm300, %v889, 0
      %v987 = vsel %vm300, %v890, 0
      %v989 = vsel %vm373, %v908, 0
      %991 = vmatpush.msra.mxu0 0.0
      %992 = vmatpush.msra.mxu0 0.0
      %993 = vmatpush.msra.mxu0 0.0
      %994 = vmatpush.msra.mxu0 0.0
      %995 = vmatpush.msra.mxu0 0.0
      %996 = vmatpush.msra.mxu0 0.0
      %997 = vmatpush.msra.mxu0 0.0
      %998 = vmatpush.msra.mxu0 %v989
      %999 = vmatpush.msra.mxu0 %v906
      %1000 = vmatpush.msra.mxu0 %v904
      %1001 = vmatpush.msra.mxu0 %v902
      %1002 = vmatpush.msra.mxu0 %v900
      %1003 = vmatpush.msra.mxu0 %v898
      %1004 = vmatpush.msra.mxu0 %v896
      %1005 = vmatpush.msra.mxu0 %v894
      %1006 = vmatpush.msra.mxu0 %v892
      %1007 = vmatmul.f32.gmra.mxu0 %v918
      %v1008 = vpop.f32.mrf.mxu0
      %v1009 = vadd.f32 0.0, %v1008
      %1010 = vmatmul.f32.gmra.mxu0 %v921
      %v1011 = vpop.f32.mrf.mxu0
      %v1012 = vadd.f32 0.0, %v1011
      %1013 = vmatmul.f32.gmra.mxu0 %v924
      %v1014 = vpop.f32.mrf.mxu0
      %v1015 = vadd.f32 0.0, %v1014
      %1016 = vmatmul.f32.gmra.mxu0 %v927
      %v1017 = vpop.f32.mrf.mxu0
      %v1018 = vadd.f32 0.0, %v1017
      %1019 = vmatmul.f32.gmra.mxu0 %v930
      %v1020 = vpop.f32.mrf.mxu0
      %v1021 = vadd.f32 0.0, %v1020
      %1022 = vmatmul.f32.gmra.mxu0 %v933
      %v1023 = vpop.f32.mrf.mxu0
      %v1024 = vadd.f32 0.0, %v1023
      %1025 = vmatmul.f32.gmra.mxu0 %v936
      %v1026 = vpop.f32.mrf.mxu0
      %v1027 = vadd.f32 0.0, %v1026
      %1028 = vmatmul.f32.gmra.mxu0 %v939
      %v1029 = vpop.f32.mrf.mxu0
      %v1030 = vadd.f32 0.0, %v1029
      %1031 = vmatmul.f32.gmra.mxu0 %v942
      %v1032 = vpop.f32.mrf.mxu0
      %v1033 = vadd.f32 0.0, %v1032
      %1034 = vmatmul.f32.gmra.mxu0 %v945
      %v1035 = vpop.f32.mrf.mxu0
      %v1036 = vadd.f32 0.0, %v1035
      %1037 = vmatmul.f32.gmra.mxu0 %v948
      %v1038 = vpop.f32.mrf.mxu0
      %v1039 = vadd.f32 0.0, %v1038
      %1040 = vmatmul.f32.gmra.mxu0 %v951
      %v1041 = vpop.f32.mrf.mxu0
      %v1042 = vadd.f32 0.0, %v1041
      %1043 = vmatmul.f32.gmra.mxu0 %v954
      %v1044 = vpop.f32.mrf.mxu0
      %v1045 = vadd.f32 0.0, %v1044
      %1046 = vmatmul.f32.gmra.mxu0 %v957
      %v1047 = vpop.f32.mrf.mxu0
      %v1048 = vadd.f32 0.0, %v1047
      %1049 = vmatmul.f32.gmra.mxu0 %v960
      %v1050 = vpop.f32.mrf.mxu0
      %v1051 = vadd.f32 0.0, %v1050
      %1052 = vmatmul.f32.gmra.mxu0 %v963
      %v1053 = vpop.f32.mrf.mxu0
      %v1054 = vadd.f32 0.0, %v1053
      %1055 = vmatmul.f32.gmra.mxu0 %v966
      %v1056 = vpop.f32.mrf.mxu0
      %v1057 = vadd.f32 0.0, %v1056
      %1058 = vmatmul.f32.gmra.mxu0 %v969
      %v1059 = vpop.f32.mrf.mxu0
      %v1060 = vadd.f32 0.0, %v1059
      %1061 = vmatmul.f32.gmra.mxu0 %v972
      %v1062 = vpop.f32.mrf.mxu0
      %v1063 = vadd.f32 0.0, %v1062
      %1064 = vmatmul.f32.gmra.mxu0 %v975
      %v1065 = vpop.f32.mrf.mxu0
      %v1066 = vadd.f32 0.0, %v1065
      %1067 = vmatmul.f32.gmra.mxu0 %v978
      %v1068 = vpop.f32.mrf.mxu0
      %v1069 = vadd.f32 0.0, %v1068
      %1070 = vmatmul.f32.gmra.mxu0 %v981
      %v1071 = vpop.f32.mrf.mxu0
      %v1072 = vadd.f32 0.0, %v1071
      %1073 = vmatmul.f32.gmra.mxu0 %v984
      %v1074 = vpop.f32.mrf.mxu0
      %v1075 = vadd.f32 0.0, %v1074
      %1076 = vmatmul.f32.gmra.mxu0 %v987
      %v1077 = vpop.f32.mrf.mxu0
      %v1078 = vadd.f32 0.0, %v1077
      %1079 = vdwg.mxu0
      %v1080 = vadd.f32 %v842, %v1009
      %v1081 = vadd.f32 %v843, %v1012
      %v1082 = vadd.f32 %v844, %v1015
      %v1083 = vadd.f32 %v845, %v1018
      %v1084 = vadd.f32 %v846, %v1021
      %v1085 = vadd.f32 %v847, %v1024
      %v1086 = vadd.f32 %v848, %v1027
      %v1087 = vadd.f32 %v849, %v1030
      %v1088 = vadd.f32 %v850, %v1033
      %v1089 = vadd.f32 %v851, %v1036
      %v1090 = vadd.f32 %v852, %v1039
      %v1091 = vadd.f32 %v853, %v1042
      %v1092 = vadd.f32 %v854, %v1045
      %v1093 = vadd.f32 %v855, %v1048
      %v1094 = vadd.f32 %v856, %v1051
      %v1095 = vadd.f32 %v857, %v1054
      %v1096 = vadd.f32 %v858, %v1057
      %v1097 = vadd.f32 %v859, %v1060
      %v1098 = vadd.f32 %v860, %v1063
      %v1099 = vadd.f32 %v861, %v1066
      %v1100 = vadd.f32 %v862, %v1069
      %v1101 = vadd.f32 %v863, %v1072
      %v1102 = vadd.f32 %v864, %v1075
      %v1103 = vadd.f32 %v865, %v1078
      %s1104 = scalar_lea.vmem %s1, 768
      %v1105 = vld [vmem:[%s1104] sm:$0xff]
      %v1106 = vld [vmem:[%s1104 + $0x8] sm:$0xff]
      %v1107 = vld [vmem:[%s1104 + $0x10] sm:$0xff]
      %v1108 = vld [vmem:[%s1104 + $0x18] sm:$0xff]
      %v1109 = vld [vmem:[%s1104 + $0x20] sm:$0xff]
      %v1110 = vld [vmem:[%s1104 + $0x28] sm:$0xff]
      %v1111 = vld [vmem:[%s1104 + $0x30] sm:$0xff]
      %v1112 = vld [vmem:[%s1104 + $0x38] sm:$0xff]
      %v1113 = vld [vmem:[%s1104 + $0x40] sm:$0xff]
      %v1114 = vld [vmem:[%s1104 + $0x48] sm:$0xff]
      %v1115 = vld [vmem:[%s1104 + $0x50] sm:$0xff]
      %v1116 = vld [vmem:[%s1104 + $0x58] sm:$0xff]
      %v1117 = vld [vmem:[%s1104 + $0x60] sm:$0xff]
      %v1118 = vld [vmem:[%s1104 + $0x68] sm:$0xff]
      %v1119 = vld [vmem:[%s1104 + $0x70] sm:$0xff]
      %v1120 = vld [vmem:[%s1104 + $0x78] sm:$0xff]
      %v1121 = vld [vmem:[%s1104 + $0x80] sm:$0xff]
      %v1122 = vld [vmem:[%s1104 + $0x88] sm:$0xff]
      %v1123 = vld [vmem:[%s1104 + $0x90] sm:$0xff]
      %v1124 = vld [vmem:[%s1104 + $0x98] sm:$0xff]
      %v1125 = vld [vmem:[%s1104 + $0xa0] sm:$0xff]
      %v1126 = vld [vmem:[%s1104 + $0xa8] sm:$0xff]
      %v1127 = vld [vmem:[%s1104 + $0xb0] sm:$0xff]
      %v1128 = vld [vmem:[%s1104 + $0xb8] sm:$0xff]
      %1129 = vrot.lane.b32.xlu0 %v207, 121
      %v1130 = vpop.permute.xlu0 %1129
      %1131 = vrot.lane.b32.xlu0 %v208, 121
      %v1132 = vpop.permute.xlu0 %1131
      %1133 = vrot.lane.b32.xlu0 %v209, 121
      %v1134 = vpop.permute.xlu0 %1133
      %1135 = vrot.lane.b32.xlu0 %v210, 121
      %v1136 = vpop.permute.xlu0 %1135
      %1137 = vrot.lane.b32.xlu0 %v211, 121
      %v1138 = vpop.permute.xlu0 %1137
      %1139 = vrot.lane.b32.xlu0 %v212, 121
      %v1140 = vpop.permute.xlu0 %1139
      %1141 = vrot.lane.b32.xlu0 %v213, 121
      %v1142 = vpop.permute.xlu0 %1141
      %1143 = vrot.lane.b32.xlu0 %v214, 121
      %v1144 = vpop.permute.xlu0 %1143
      %1145 = vrot.lane.b32.xlu0 %v215, 121
      %v1146 = vpop.permute.xlu0 %1145
      %v1156 = vsel %vm300, %v1105, 0
      %v1159 = vsel %vm300, %v1106, 0
      %v1162 = vsel %vm300, %v1107, 0
      %v1165 = vsel %vm300, %v1108, 0
      %v1168 = vsel %vm300, %v1109, 0
      %v1171 = vsel %vm300, %v1110, 0
      %v1174 = vsel %vm300, %v1111, 0
      %v1177 = vsel %vm300, %v1112, 0
      %v1180 = vsel %vm300, %v1113, 0
      %v1183 = vsel %vm300, %v1114, 0
      %v1186 = vsel %vm300, %v1115, 0
      %v1189 = vsel %vm300, %v1116, 0
      %v1192 = vsel %vm300, %v1117, 0
      %v1195 = vsel %vm300, %v1118, 0
      %v1198 = vsel %vm300, %v1119, 0
      %v1201 = vsel %vm300, %v1120, 0
      %v1204 = vsel %vm300, %v1121, 0
      %v1207 = vsel %vm300, %v1122, 0
      %v1210 = vsel %vm300, %v1123, 0
      %v1213 = vsel %vm300, %v1124, 0
      %v1216 = vsel %vm300, %v1125, 0
      %v1219 = vsel %vm300, %v1126, 0
      %v1222 = vsel %vm300, %v1127, 0
      %v1225 = vsel %vm300, %v1128, 0
      %v1227 = vsel %vm373, %v1146, 0
      %1229 = vmatpush.msra.mxu0 0.0
      %1230 = vmatpush.msra.mxu0 0.0
      %1231 = vmatpush.msra.mxu0 0.0
      %1232 = vmatpush.msra.mxu0 0.0
      %1233 = vmatpush.msra.mxu0 0.0
      %1234 = vmatpush.msra.mxu0 0.0
      %1235 = vmatpush.msra.mxu0 0.0
      %1236 = vmatpush.msra.mxu0 %v1227
      %1237 = vmatpush.msra.mxu0 %v1144
      %1238 = vmatpush.msra.mxu0 %v1142
      %1239 = vmatpush.msra.mxu0 %v1140
      %1240 = vmatpush.msra.mxu0 %v1138
      %1241 = vmatpush.msra.mxu0 %v1136
      %1242 = vmatpush.msra.mxu0 %v1134
      %1243 = vmatpush.msra.mxu0 %v1132
      %1244 = vmatpush.msra.mxu0 %v1130
      %1245 = vmatmul.f32.gmra.mxu0 %v1156
      %v1246 = vpop.f32.mrf.mxu0
      %v1247 = vadd.f32 0.0, %v1246
      %1248 = vmatmul.f32.gmra.mxu0 %v1159
      %v1249 = vpop.f32.mrf.mxu0
      %v1250 = vadd.f32 0.0, %v1249
      %1251 = vmatmul.f32.gmra.mxu0 %v1162
      %v1252 = vpop.f32.mrf.mxu0
      %v1253 = vadd.f32 0.0, %v1252
      %1254 = vmatmul.f32.gmra.mxu0 %v1165
      %v1255 = vpop.f32.mrf.mxu0
      %v1256 = vadd.f32 0.0, %v1255
      %1257 = vmatmul.f32.gmra.mxu0 %v1168
      %v1258 = vpop.f32.mrf.mxu0
      %v1259 = vadd.f32 0.0, %v1258
      %1260 = vmatmul.f32.gmra.mxu0 %v1171
      %v1261 = vpop.f32.mrf.mxu0
      %v1262 = vadd.f32 0.0, %v1261
      %1263 = vmatmul.f32.gmra.mxu0 %v1174
      %v1264 = vpop.f32.mrf.mxu0
      %v1265 = vadd.f32 0.0, %v1264
      %1266 = vmatmul.f32.gmra.mxu0 %v1177
      %v1267 = vpop.f32.mrf.mxu0
      %v1268 = vadd.f32 0.0, %v1267
      %1269 = vmatmul.f32.gmra.mxu0 %v1180
      %v1270 = vpop.f32.mrf.mxu0
      %v1271 = vadd.f32 0.0, %v1270
      %1272 = vmatmul.f32.gmra.mxu0 %v1183
      %v1273 = vpop.f32.mrf.mxu0
      %v1274 = vadd.f32 0.0, %v1273
      %1275 = vmatmul.f32.gmra.mxu0 %v1186
      %v1276 = vpop.f32.mrf.mxu0
      %v1277 = vadd.f32 0.0, %v1276
      %1278 = vmatmul.f32.gmra.mxu0 %v1189
      %v1279 = vpop.f32.mrf.mxu0
      %v1280 = vadd.f32 0.0, %v1279
      %1281 = vmatmul.f32.gmra.mxu0 %v1192
      %v1282 = vpop.f32.mrf.mxu0
      %v1283 = vadd.f32 0.0, %v1282
      %1284 = vmatmul.f32.gmra.mxu0 %v1195
      %v1285 = vpop.f32.mrf.mxu0
      %v1286 = vadd.f32 0.0, %v1285
      %1287 = vmatmul.f32.gmra.mxu0 %v1198
      %v1288 = vpop.f32.mrf.mxu0
      %v1289 = vadd.f32 0.0, %v1288
      %1290 = vmatmul.f32.gmra.mxu0 %v1201
      %v1291 = vpop.f32.mrf.mxu0
      %v1292 = vadd.f32 0.0, %v1291
      %1293 = vmatmul.f32.gmra.mxu0 %v1204
      %v1294 = vpop.f32.mrf.mxu0
      %v1295 = vadd.f32 0.0, %v1294
      %1296 = vmatmul.f32.gmra.mxu0 %v1207
      %v1297 = vpop.f32.mrf.mxu0
      %v1298 = vadd.f32 0.0, %v1297
      %1299 = vmatmul.f32.gmra.mxu0 %v1210
      %v1300 = vpop.f32.mrf.mxu0
      %v1301 = vadd.f32 0.0, %v1300
      %1302 = vmatmul.f32.gmra.mxu0 %v1213
      %v1303 = vpop.f32.mrf.mxu0
      %v1304 = vadd.f32 0.0, %v1303
      %1305 = vmatmul.f32.gmra.mxu0 %v1216
      %v1306 = vpop.f32.mrf.mxu0
      %v1307 = vadd.f32 0.0, %v1306
      %1308 = vmatmul.f32.gmra.mxu0 %v1219
      %v1309 = vpop.f32.mrf.mxu0
      %v1310 = vadd.f32 0.0, %v1309
      %1311 = vmatmul.f32.gmra.mxu0 %v1222
      %v1312 = vpop.f32.mrf.mxu0
      %v1313 = vadd.f32 0.0, %v1312
      %1314 = vmatmul.f32.gmra.mxu0 %v1225
      %v1315 = vpop.f32.mrf.mxu0
      %v1316 = vadd.f32 0.0, %v1315
      %1317 = vdwg.mxu0
      %v1318 = vadd.f32 %v1080, %v1247
      %v1319 = vadd.f32 %v1081, %v1250
      %v1320 = vadd.f32 %v1082, %v1253
      %v1321 = vadd.f32 %v1083, %v1256
      %v1322 = vadd.f32 %v1084, %v1259
      %v1323 = vadd.f32 %v1085, %v1262
      %v1324 = vadd.f32 %v1086, %v1265
      %v1325 = vadd.f32 %v1087, %v1268
      %v1326 = vadd.f32 %v1088, %v1271
      %v1327 = vadd.f32 %v1089, %v1274
      %v1328 = vadd.f32 %v1090, %v1277
      %v1329 = vadd.f32 %v1091, %v1280
      %v1330 = vadd.f32 %v1092, %v1283
      %v1331 = vadd.f32 %v1093, %v1286
      %v1332 = vadd.f32 %v1094, %v1289
      %v1333 = vadd.f32 %v1095, %v1292
      %v1334 = vadd.f32 %v1096, %v1295
      %v1335 = vadd.f32 %v1097, %v1298
      %v1336 = vadd.f32 %v1098, %v1301
      %v1337 = vadd.f32 %v1099, %v1304
      %v1338 = vadd.f32 %v1100, %v1307
      %v1339 = vadd.f32 %v1101, %v1310
      %v1340 = vadd.f32 %v1102, %v1313
      %v1341 = vadd.f32 %v1103, %v1316
      %s1342 = scalar_lea.vmem %s1, 960
      %v1343 = vld [vmem:[%s1342] sm:$0xff]
      %v1344 = vld [vmem:[%s1342 + $0x8] sm:$0xff]
      %v1345 = vld [vmem:[%s1342 + $0x10] sm:$0xff]
      %v1346 = vld [vmem:[%s1342 + $0x18] sm:$0xff]
      %v1347 = vld [vmem:[%s1342 + $0x20] sm:$0xff]
      %v1348 = vld [vmem:[%s1342 + $0x28] sm:$0xff]
      %v1349 = vld [vmem:[%s1342 + $0x30] sm:$0xff]
      %v1350 = vld [vmem:[%s1342 + $0x38] sm:$0xff]
      %v1351 = vld [vmem:[%s1342 + $0x40] sm:$0xff]
      %v1352 = vld [vmem:[%s1342 + $0x48] sm:$0xff]
      %v1353 = vld [vmem:[%s1342 + $0x50] sm:$0xff]
      %v1354 = vld [vmem:[%s1342 + $0x58] sm:$0xff]
      %v1355 = vld [vmem:[%s1342 + $0x60] sm:$0xff]
      %v1356 = vld [vmem:[%s1342 + $0x68] sm:$0xff]
      %v1357 = vld [vmem:[%s1342 + $0x70] sm:$0xff]
      %v1358 = vld [vmem:[%s1342 + $0x78] sm:$0xff]
      %v1359 = vld [vmem:[%s1342 + $0x80] sm:$0xff]
      %v1360 = vld [vmem:[%s1342 + $0x88] sm:$0xff]
      %v1361 = vld [vmem:[%s1342 + $0x90] sm:$0xff]
      %v1362 = vld [vmem:[%s1342 + $0x98] sm:$0xff]
      %v1363 = vld [vmem:[%s1342 + $0xa0] sm:$0xff]
      %v1364 = vld [vmem:[%s1342 + $0xa8] sm:$0xff]
      %v1365 = vld [vmem:[%s1342 + $0xb0] sm:$0xff]
      %v1366 = vld [vmem:[%s1342 + $0xb8] sm:$0xff]
      %1367 = vrot.lane.b32.xlu0 %v207, 120
      %v1368 = vpop.permute.xlu0 %1367
      %1369 = vrot.lane.b32.xlu0 %v208, 120
      %v1370 = vpop.permute.xlu0 %1369
      %1371 = vrot.lane.b32.xlu0 %v209, 120
      %v1372 = vpop.permute.xlu0 %1371
      %1373 = vrot.lane.b32.xlu0 %v210, 120
      %v1374 = vpop.permute.xlu0 %1373
      %1375 = vrot.lane.b32.xlu0 %v211, 120
      %v1376 = vpop.permute.xlu0 %1375
      %1377 = vrot.lane.b32.xlu0 %v212, 120
      %v1378 = vpop.permute.xlu0 %1377
      %1379 = vrot.lane.b32.xlu0 %v213, 120
      %v1380 = vpop.permute.xlu0 %1379
      %1381 = vrot.lane.b32.xlu0 %v214, 120
      %v1382 = vpop.permute.xlu0 %1381
      %1383 = vrot.lane.b32.xlu0 %v215, 120
      %v1384 = vpop.permute.xlu0 %1383
      %v1394 = vsel %vm300, %v1343, 0
      %v1397 = vsel %vm300, %v1344, 0
      %v1400 = vsel %vm300, %v1345, 0
      %v1403 = vsel %vm300, %v1346, 0
      %v1406 = vsel %vm300, %v1347, 0
      %v1409 = vsel %vm300, %v1348, 0
      %v1412 = vsel %vm300, %v1349, 0
      %v1415 = vsel %vm300, %v1350, 0
      %v1418 = vsel %vm300, %v1351, 0
      %v1421 = vsel %vm300, %v1352, 0
      %v1424 = vsel %vm300, %v1353, 0
      %v1427 = vsel %vm300, %v1354, 0
      %v1430 = vsel %vm300, %v1355, 0
      %v1433 = vsel %vm300, %v1356, 0
      %v1436 = vsel %vm300, %v1357, 0
      %v1439 = vsel %vm300, %v1358, 0
      %v1442 = vsel %vm300, %v1359, 0
      %v1445 = vsel %vm300, %v1360, 0
      %v1448 = vsel %vm300, %v1361, 0
      %v1451 = vsel %vm300, %v1362, 0
      %v1454 = vsel %vm300, %v1363, 0
      %v1457 = vsel %vm300, %v1364, 0
      %v1460 = vsel %vm300, %v1365, 0
      %v1463 = vsel %vm300, %v1366, 0
      %v1465 = vsel %vm373, %v1384, 0
      %1467 = vmatpush.msra.mxu0 0.0
      %1468 = vmatpush.msra.mxu0 0.0
      %1469 = vmatpush.msra.mxu0 0.0
      %1470 = vmatpush.msra.mxu0 0.0
      %1471 = vmatpush.msra.mxu0 0.0
      %1472 = vmatpush.msra.mxu0 0.0
      %1473 = vmatpush.msra.mxu0 0.0
      %1474 = vmatpush.msra.mxu0 %v1465
      %1475 = vmatpush.msra.mxu0 %v1382
      %1476 = vmatpush.msra.mxu0 %v1380
      %1477 = vmatpush.msra.mxu0 %v1378
      %1478 = vmatpush.msra.mxu0 %v1376
      %1479 = vmatpush.msra.mxu0 %v1374
      %1480 = vmatpush.msra.mxu0 %v1372
      %1481 = vmatpush.msra.mxu0 %v1370
      %1482 = vmatpush.msra.mxu0 %v1368
      %1483 = vmatmul.f32.gmra.mxu0 %v1394
      %v1484 = vpop.f32.mrf.mxu0
      %v1485 = vadd.f32 0.0, %v1484
      %1486 = vmatmul.f32.gmra.mxu0 %v1397
      %v1487 = vpop.f32.mrf.mxu0
      %v1488 = vadd.f32 0.0, %v1487
      %1489 = vmatmul.f32.gmra.mxu0 %v1400
      %v1490 = vpop.f32.mrf.mxu0
      %v1491 = vadd.f32 0.0, %v1490
      %1492 = vmatmul.f32.gmra.mxu0 %v1403
      %v1493 = vpop.f32.mrf.mxu0
      %v1494 = vadd.f32 0.0, %v1493
      %1495 = vmatmul.f32.gmra.mxu0 %v1406
      %v1496 = vpop.f32.mrf.mxu0
      %v1497 = vadd.f32 0.0, %v1496
      %1498 = vmatmul.f32.gmra.mxu0 %v1409
      %v1499 = vpop.f32.mrf.mxu0
      %v1500 = vadd.f32 0.0, %v1499
      %1501 = vmatmul.f32.gmra.mxu0 %v1412
      %v1502 = vpop.f32.mrf.mxu0
      %v1503 = vadd.f32 0.0, %v1502
      %1504 = vmatmul.f32.gmra.mxu0 %v1415
      %v1505 = vpop.f32.mrf.mxu0
      %v1506 = vadd.f32 0.0, %v1505
      %1507 = vmatmul.f32.gmra.mxu0 %v1418
      %v1508 = vpop.f32.mrf.mxu0
      %v1509 = vadd.f32 0.0, %v1508
      %1510 = vmatmul.f32.gmra.mxu0 %v1421
      %v1511 = vpop.f32.mrf.mxu0
      %v1512 = vadd.f32 0.0, %v1511
      %1513 = vmatmul.f32.gmra.mxu0 %v1424
      %v1514 = vpop.f32.mrf.mxu0
      %v1515 = vadd.f32 0.0, %v1514
      %1516 = vmatmul.f32.gmra.mxu0 %v1427
      %v1517 = vpop.f32.mrf.mxu0
      %v1518 = vadd.f32 0.0, %v1517
      %1519 = vmatmul.f32.gmra.mxu0 %v1430
      %v1520 = vpop.f32.mrf.mxu0
      %v1521 = vadd.f32 0.0, %v1520
      %1522 = vmatmul.f32.gmra.mxu0 %v1433
      %v1523 = vpop.f32.mrf.mxu0
      %v1524 = vadd.f32 0.0, %v1523
      %1525 = vmatmul.f32.gmra.mxu0 %v1436
      %v1526 = vpop.f32.mrf.mxu0
      %v1527 = vadd.f32 0.0, %v1526
      %1528 = vmatmul.f32.gmra.mxu0 %v1439
      %v1529 = vpop.f32.mrf.mxu0
      %v1530 = vadd.f32 0.0, %v1529
      %1531 = vmatmul.f32.gmra.mxu0 %v1442
      %v1532 = vpop.f32.mrf.mxu0
      %v1533 = vadd.f32 0.0, %v1532
      %1534 = vmatmul.f32.gmra.mxu0 %v1445
      %v1535 = vpop.f32.mrf.mxu0
      %v1536 = vadd.f32 0.0, %v1535
      %1537 = vmatmul.f32.gmra.mxu0 %v1448
      %v1538 = vpop.f32.mrf.mxu0
      %v1539 = vadd.f32 0.0, %v1538
      %1540 = vmatmul.f32.gmra.mxu0 %v1451
      %v1541 = vpop.f32.mrf.mxu0
      %v1542 = vadd.f32 0.0, %v1541
      %1543 = vmatmul.f32.gmra.mxu0 %v1454
      %v1544 = vpop.f32.mrf.mxu0
      %v1545 = vadd.f32 0.0, %v1544
      %1546 = vmatmul.f32.gmra.mxu0 %v1457
      %v1547 = vpop.f32.mrf.mxu0
      %v1548 = vadd.f32 0.0, %v1547
      %1549 = vmatmul.f32.gmra.mxu0 %v1460
      %v1550 = vpop.f32.mrf.mxu0
      %v1551 = vadd.f32 0.0, %v1550
      %1552 = vmatmul.f32.gmra.mxu0 %v1463
      %v1553 = vpop.f32.mrf.mxu0
      %v1554 = vadd.f32 0.0, %v1553
      %1555 = vdwg.mxu0
      %v1556 = vadd.f32 %v1318, %v1485
      %v1557 = vadd.f32 %v1319, %v1488
      %v1558 = vadd.f32 %v1320, %v1491
      %v1559 = vadd.f32 %v1321, %v1494
      %v1560 = vadd.f32 %v1322, %v1497
      %v1561 = vadd.f32 %v1323, %v1500
      %v1562 = vadd.f32 %v1324, %v1503
      %v1563 = vadd.f32 %v1325, %v1506
      %v1564 = vadd.f32 %v1326, %v1509
      %v1565 = vadd.f32 %v1327, %v1512
      %v1566 = vadd.f32 %v1328, %v1515
      %v1567 = vadd.f32 %v1329, %v1518
      %v1568 = vadd.f32 %v1330, %v1521
      %v1569 = vadd.f32 %v1331, %v1524
      %v1570 = vadd.f32 %v1332, %v1527
      %v1571 = vadd.f32 %v1333, %v1530
      %v1572 = vadd.f32 %v1334, %v1533
      %v1573 = vadd.f32 %v1335, %v1536
      %v1574 = vadd.f32 %v1336, %v1539
      %v1575 = vadd.f32 %v1337, %v1542
      %v1576 = vadd.f32 %v1338, %v1545
      %v1577 = vadd.f32 %v1339, %v1548
      %v1578 = vadd.f32 %v1340, %v1551
      %v1579 = vadd.f32 %v1341, %v1554
      %s1580 = scalar_lea.vmem %s1, 1152
      %v1581 = vld [vmem:[%s1580] sm:$0xff]
      %v1582 = vld [vmem:[%s1580 + $0x8] sm:$0xff]
      %v1583 = vld [vmem:[%s1580 + $0x10] sm:$0xff]
      %v1584 = vld [vmem:[%s1580 + $0x18] sm:$0xff]
      %v1585 = vld [vmem:[%s1580 + $0x20] sm:$0xff]
      %v1586 = vld [vmem:[%s1580 + $0x28] sm:$0xff]
      %v1587 = vld [vmem:[%s1580 + $0x30] sm:$0xff]
      %v1588 = vld [vmem:[%s1580 + $0x38] sm:$0xff]
      %v1589 = vld [vmem:[%s1580 + $0x40] sm:$0xff]
      %v1590 = vld [vmem:[%s1580 + $0x48] sm:$0xff]
      %v1591 = vld [vmem:[%s1580 + $0x50] sm:$0xff]
      %v1592 = vld [vmem:[%s1580 + $0x58] sm:$0xff]
      %v1593 = vld [vmem:[%s1580 + $0x60] sm:$0xff]
      %v1594 = vld [vmem:[%s1580 + $0x68] sm:$0xff]
      %v1595 = vld [vmem:[%s1580 + $0x70] sm:$0xff]
      %v1596 = vld [vmem:[%s1580 + $0x78] sm:$0xff]
      %v1597 = vld [vmem:[%s1580 + $0x80] sm:$0xff]
      %v1598 = vld [vmem:[%s1580 + $0x88] sm:$0xff]
      %v1599 = vld [vmem:[%s1580 + $0x90] sm:$0xff]
      %v1600 = vld [vmem:[%s1580 + $0x98] sm:$0xff]
      %v1601 = vld [vmem:[%s1580 + $0xa0] sm:$0xff]
      %v1602 = vld [vmem:[%s1580 + $0xa8] sm:$0xff]
      %v1603 = vld [vmem:[%s1580 + $0xb0] sm:$0xff]
      %v1604 = vld [vmem:[%s1580 + $0xb8] sm:$0xff]
      %1605 = vrot.lane.b32.xlu0 %v207, 116
      %v1606 = vpop.permute.xlu0 %1605
      %1607 = vrot.lane.b32.xlu0 %v208, 116
      %v1608 = vpop.permute.xlu0 %1607
      %1609 = vrot.lane.b32.xlu0 %v209, 116
      %v1610 = vpop.permute.xlu0 %1609
      %1611 = vrot.lane.b32.xlu0 %v210, 116
      %v1612 = vpop.permute.xlu0 %1611
      %1613 = vrot.lane.b32.xlu0 %v211, 116
      %v1614 = vpop.permute.xlu0 %1613
      %1615 = vrot.lane.b32.xlu0 %v212, 116
      %v1616 = vpop.permute.xlu0 %1615
      %1617 = vrot.lane.b32.xlu0 %v213, 116
      %v1618 = vpop.permute.xlu0 %1617
      %1619 = vrot.lane.b32.xlu0 %v214, 116
      %v1620 = vpop.permute.xlu0 %1619
      %1621 = vrot.lane.b32.xlu0 %v215, 116
      %v1622 = vpop.permute.xlu0 %1621
      %v1632 = vsel %vm300, %v1581, 0
      %v1635 = vsel %vm300, %v1582, 0
      %v1638 = vsel %vm300, %v1583, 0
      %v1641 = vsel %vm300, %v1584, 0
      %v1644 = vsel %vm300, %v1585, 0
      %v1647 = vsel %vm300, %v1586, 0
      %v1650 = vsel %vm300, %v1587, 0
      %v1653 = vsel %vm300, %v1588, 0
      %v1656 = vsel %vm300, %v1589, 0
      %v1659 = vsel %vm300, %v1590, 0
      %v1662 = vsel %vm300, %v1591, 0
      %v1665 = vsel %vm300, %v1592, 0
      %v1668 = vsel %vm300, %v1593, 0
      %v1671 = vsel %vm300, %v1594, 0
      %v1674 = vsel %vm300, %v1595, 0
      %v1677 = vsel %vm300, %v1596, 0
      %v1680 = vsel %vm300, %v1597, 0
      %v1683 = vsel %vm300, %v1598, 0
      %v1686 = vsel %vm300, %v1599, 0
      %v1689 = vsel %vm300, %v1600, 0
      %v1692 = vsel %vm300, %v1601, 0
      %v1695 = vsel %vm300, %v1602, 0
      %v1698 = vsel %vm300, %v1603, 0
      %v1701 = vsel %vm300, %v1604, 0
      %v1703 = vsel %vm373, %v1622, 0
      %1705 = vmatpush.msra.mxu0 0.0
      %1706 = vmatpush.msra.mxu0 0.0
      %1707 = vmatpush.msra.mxu0 0.0
      %1708 = vmatpush.msra.mxu0 0.0
      %1709 = vmatpush.msra.mxu0 0.0
      %1710 = vmatpush.msra.mxu0 0.0
      %1711 = vmatpush.msra.mxu0 0.0
      %1712 = vmatpush.msra.mxu0 %v1703
      %1713 = vmatpush.msra.mxu0 %v1620
      %1714 = vmatpush.msra.mxu0 %v1618
      %1715 = vmatpush.msra.mxu0 %v1616
      %1716 = vmatpush.msra.mxu0 %v1614
      %1717 = vmatpush.msra.mxu0 %v1612
      %1718 = vmatpush.msra.mxu0 %v1610
      %1719 = vmatpush.msra.mxu0 %v1608
      %1720 = vmatpush.msra.mxu0 %v1606
      %1721 = vmatmul.f32.gmra.mxu0 %v1632
      %v1722 = vpop.f32.mrf.mxu0
      %v1723 = vadd.f32 0.0, %v1722
      %1724 = vmatmul.f32.gmra.mxu0 %v1635
      %v1725 = vpop.f32.mrf.mxu0
      %v1726 = vadd.f32 0.0, %v1725
      %1727 = vmatmul.f32.gmra.mxu0 %v1638
      %v1728 = vpop.f32.mrf.mxu0
      %v1729 = vadd.f32 0.0, %v1728
      %1730 = vmatmul.f32.gmra.mxu0 %v1641
      %v1731 = vpop.f32.mrf.mxu0
      %v1732 = vadd.f32 0.0, %v1731
      %1733 = vmatmul.f32.gmra.mxu0 %v1644
      %v1734 = vpop.f32.mrf.mxu0
      %v1735 = vadd.f32 0.0, %v1734
      %1736 = vmatmul.f32.gmra.mxu0 %v1647
      %v1737 = vpop.f32.mrf.mxu0
      %v1738 = vadd.f32 0.0, %v1737
      %1739 = vmatmul.f32.gmra.mxu0 %v1650
      %v1740 = vpop.f32.mrf.mxu0
      %v1741 = vadd.f32 0.0, %v1740
      %1742 = vmatmul.f32.gmra.mxu0 %v1653
      %v1743 = vpop.f32.mrf.mxu0
      %v1744 = vadd.f32 0.0, %v1743
      %1745 = vmatmul.f32.gmra.mxu0 %v1656
      %v1746 = vpop.f32.mrf.mxu0
      %v1747 = vadd.f32 0.0, %v1746
      %1748 = vmatmul.f32.gmra.mxu0 %v1659
      %v1749 = vpop.f32.mrf.mxu0
      %v1750 = vadd.f32 0.0, %v1749
      %1751 = vmatmul.f32.gmra.mxu0 %v1662
      %v1752 = vpop.f32.mrf.mxu0
      %v1753 = vadd.f32 0.0, %v1752
      %1754 = vmatmul.f32.gmra.mxu0 %v1665
      %v1755 = vpop.f32.mrf.mxu0
      %v1756 = vadd.f32 0.0, %v1755
      %1757 = vmatmul.f32.gmra.mxu0 %v1668
      %v1758 = vpop.f32.mrf.mxu0
      %v1759 = vadd.f32 0.0, %v1758
      %1760 = vmatmul.f32.gmra.mxu0 %v1671
      %v1761 = vpop.f32.mrf.mxu0
      %v1762 = vadd.f32 0.0, %v1761
      %1763 = vmatmul.f32.gmra.mxu0 %v1674
      %v1764 = vpop.f32.mrf.mxu0
      %v1765 = vadd.f32 0.0, %v1764
      %1766 = vmatmul.f32.gmra.mxu0 %v1677
      %v1767 = vpop.f32.mrf.mxu0
      %v1768 = vadd.f32 0.0, %v1767
      %1769 = vmatmul.f32.gmra.mxu0 %v1680
      %v1770 = vpop.f32.mrf.mxu0
      %v1771 = vadd.f32 0.0, %v1770
      %1772 = vmatmul.f32.gmra.mxu0 %v1683
      %v1773 = vpop.f32.mrf.mxu0
      %v1774 = vadd.f32 0.0, %v1773
      %1775 = vmatmul.f32.gmra.mxu0 %v1686
      %v1776 = vpop.f32.mrf.mxu0
      %v1777 = vadd.f32 0.0, %v1776
      %1778 = vmatmul.f32.gmra.mxu0 %v1689
      %v1779 = vpop.f32.mrf.mxu0
      %v1780 = vadd.f32 0.0, %v1779
      %1781 = vmatmul.f32.gmra.mxu0 %v1692
      %v1782 = vpop.f32.mrf.mxu0
      %v1783 = vadd.f32 0.0, %v1782
      %1784 = vmatmul.f32.gmra.mxu0 %v1695
      %v1785 = vpop.f32.mrf.mxu0
      %v1786 = vadd.f32 0.0, %v1785
      %1787 = vmatmul.f32.gmra.mxu0 %v1698
      %v1788 = vpop.f32.mrf.mxu0
      %v1789 = vadd.f32 0.0, %v1788
      %1790 = vmatmul.f32.gmra.mxu0 %v1701
      %v1791 = vpop.f32.mrf.mxu0
      %v1792 = vadd.f32 0.0, %v1791
      %1793 = vdwg.mxu0
      %v1794 = vadd.f32 %v1556, %v1723
      %v1795 = vadd.f32 %v1557, %v1726
      %v1796 = vadd.f32 %v1558, %v1729
      %v1797 = vadd.f32 %v1559, %v1732
      %v1798 = vadd.f32 %v1560, %v1735
      %v1799 = vadd.f32 %v1561, %v1738
      %v1800 = vadd.f32 %v1562, %v1741
      %v1801 = vadd.f32 %v1563, %v1744
      %v1802 = vadd.f32 %v1564, %v1747
      %v1803 = vadd.f32 %v1565, %v1750
      %v1804 = vadd.f32 %v1566, %v1753
      %v1805 = vadd.f32 %v1567, %v1756
      %v1806 = vadd.f32 %v1568, %v1759
      %v1807 = vadd.f32 %v1569, %v1762
      %v1808 = vadd.f32 %v1570, %v1765
      %v1809 = vadd.f32 %v1571, %v1768
      %v1810 = vadd.f32 %v1572, %v1771
      %v1811 = vadd.f32 %v1573, %v1774
      %v1812 = vadd.f32 %v1574, %v1777
      %v1813 = vadd.f32 %v1575, %v1780
      %v1814 = vadd.f32 %v1576, %v1783
      %v1815 = vadd.f32 %v1577, %v1786
      %v1816 = vadd.f32 %v1578, %v1789
      %v1817 = vadd.f32 %v1579, %v1792
      %s1818 = scalar_lea.vmem %s1, 1344
      %v1819 = vld [vmem:[%s1818] sm:$0xff]
      %v1820 = vld [vmem:[%s1818 + $0x8] sm:$0xff]
      %v1821 = vld [vmem:[%s1818 + $0x10] sm:$0xff]
      %v1822 = vld [vmem:[%s1818 + $0x18] sm:$0xff]
      %v1823 = vld [vmem:[%s1818 + $0x20] sm:$0xff]
      %v1824 = vld [vmem:[%s1818 + $0x28] sm:$0xff]
      %v1825 = vld [vmem:[%s1818 + $0x30] sm:$0xff]
      %v1826 = vld [vmem:[%s1818 + $0x38] sm:$0xff]
      %v1827 = vld [vmem:[%s1818 + $0x40] sm:$0xff]
      %v1828 = vld [vmem:[%s1818 + $0x48] sm:$0xff]
      %v1829 = vld [vmem:[%s1818 + $0x50] sm:$0xff]
      %v1830 = vld [vmem:[%s1818 + $0x58] sm:$0xff]
      %v1831 = vld [vmem:[%s1818 + $0x60] sm:$0xff]
      %v1832 = vld [vmem:[%s1818 + $0x68] sm:$0xff]
      %v1833 = vld [vmem:[%s1818 + $0x70] sm:$0xff]
      %v1834 = vld [vmem:[%s1818 + $0x78] sm:$0xff]
      %v1835 = vld [vmem:[%s1818 + $0x80] sm:$0xff]
      %v1836 = vld [vmem:[%s1818 + $0x88] sm:$0xff]
      %v1837 = vld [vmem:[%s1818 + $0x90] sm:$0xff]
      %v1838 = vld [vmem:[%s1818 + $0x98] sm:$0xff]
      %v1839 = vld [vmem:[%s1818 + $0xa0] sm:$0xff]
      %v1840 = vld [vmem:[%s1818 + $0xa8] sm:$0xff]
      %v1841 = vld [vmem:[%s1818 + $0xb0] sm:$0xff]
      %v1842 = vld [vmem:[%s1818 + $0xb8] sm:$0xff]
      %1843 = vrot.lane.b32.xlu0 %v207, 115
      %v1844 = vpop.permute.xlu0 %1843
      %1845 = vrot.lane.b32.xlu0 %v208, 115
      %v1846 = vpop.permute.xlu0 %1845
      %1847 = vrot.lane.b32.xlu0 %v209, 115
      %v1848 = vpop.permute.xlu0 %1847
      %1849 = vrot.lane.b32.xlu0 %v210, 115
      %v1850 = vpop.permute.xlu0 %1849
      %1851 = vrot.lane.b32.xlu0 %v211, 115
      %v1852 = vpop.permute.xlu0 %1851
      %1853 = vrot.lane.b32.xlu0 %v212, 115
      %v1854 = vpop.permute.xlu0 %1853
      %1855 = vrot.lane.b32.xlu0 %v213, 115
      %v1856 = vpop.permute.xlu0 %1855
      %1857 = vrot.lane.b32.xlu0 %v214, 115
      %v1858 = vpop.permute.xlu0 %1857
      %1859 = vrot.lane.b32.xlu0 %v215, 115
      %v1860 = vpop.permute.xlu0 %1859
      %v1870 = vsel %vm300, %v1819, 0
      %v1873 = vsel %vm300, %v1820, 0
      %v1876 = vsel %vm300, %v1821, 0
      %v1879 = vsel %vm300, %v1822, 0
      %v1882 = vsel %vm300, %v1823, 0
      %v1885 = vsel %vm300, %v1824, 0
      %v1888 = vsel %vm300, %v1825, 0
      %v1891 = vsel %vm300, %v1826, 0
      %v1894 = vsel %vm300, %v1827, 0
      %v1897 = vsel %vm300, %v1828, 0
      %v1900 = vsel %vm300, %v1829, 0
      %v1903 = vsel %vm300, %v1830, 0
      %v1906 = vsel %vm300, %v1831, 0
      %v1909 = vsel %vm300, %v1832, 0
      %v1912 = vsel %vm300, %v1833, 0
      %v1915 = vsel %vm300, %v1834, 0
      %v1918 = vsel %vm300, %v1835, 0
      %v1921 = vsel %vm300, %v1836, 0
      %v1924 = vsel %vm300, %v1837, 0
      %v1927 = vsel %vm300, %v1838, 0
      %v1930 = vsel %vm300, %v1839, 0
      %v1933 = vsel %vm300, %v1840, 0
      %v1936 = vsel %vm300, %v1841, 0
      %v1939 = vsel %vm300, %v1842, 0
      %v1941 = vsel %vm373, %v1860, 0
      %1943 = vmatpush.msra.mxu0 0.0
      %1944 = vmatpush.msra.mxu0 0.0
      %1945 = vmatpush.msra.mxu0 0.0
      %1946 = vmatpush.msra.mxu0 0.0
      %1947 = vmatpush.msra.mxu0 0.0
      %1948 = vmatpush.msra.mxu0 0.0
      %1949 = vmatpush.msra.mxu0 0.0
      %1950 = vmatpush.msra.mxu0 %v1941
      %1951 = vmatpush.msra.mxu0 %v1858
      %1952 = vmatpush.msra.mxu0 %v1856
      %1953 = vmatpush.msra.mxu0 %v1854
      %1954 = vmatpush.msra.mxu0 %v1852
      %1955 = vmatpush.msra.mxu0 %v1850
      %1956 = vmatpush.msra.mxu0 %v1848
      %1957 = vmatpush.msra.mxu0 %v1846
      %1958 = vmatpush.msra.mxu0 %v1844
      %1959 = vmatmul.f32.gmra.mxu0 %v1870
      %v1960 = vpop.f32.mrf.mxu0
      %v1961 = vadd.f32 0.0, %v1960
      %1962 = vmatmul.f32.gmra.mxu0 %v1873
      %v1963 = vpop.f32.mrf.mxu0
      %v1964 = vadd.f32 0.0, %v1963
      %1965 = vmatmul.f32.gmra.mxu0 %v1876
      %v1966 = vpop.f32.mrf.mxu0
      %v1967 = vadd.f32 0.0, %v1966
      %1968 = vmatmul.f32.gmra.mxu0 %v1879
      %v1969 = vpop.f32.mrf.mxu0
      %v1970 = vadd.f32 0.0, %v1969
      %1971 = vmatmul.f32.gmra.mxu0 %v1882
      %v1972 = vpop.f32.mrf.mxu0
      %v1973 = vadd.f32 0.0, %v1972
      %1974 = vmatmul.f32.gmra.mxu0 %v1885
      %v1975 = vpop.f32.mrf.mxu0
      %v1976 = vadd.f32 0.0, %v1975
      %1977 = vmatmul.f32.gmra.mxu0 %v1888
      %v1978 = vpop.f32.mrf.mxu0
      %v1979 = vadd.f32 0.0, %v1978
      %1980 = vmatmul.f32.gmra.mxu0 %v1891
      %v1981 = vpop.f32.mrf.mxu0
      %v1982 = vadd.f32 0.0, %v1981
      %1983 = vmatmul.f32.gmra.mxu0 %v1894
      %v1984 = vpop.f32.mrf.mxu0
      %v1985 = vadd.f32 0.0, %v1984
      %1986 = vmatmul.f32.gmra.mxu0 %v1897
      %v1987 = vpop.f32.mrf.mxu0
      %v1988 = vadd.f32 0.0, %v1987
      %1989 = vmatmul.f32.gmra.mxu0 %v1900
      %v1990 = vpop.f32.mrf.mxu0
      %v1991 = vadd.f32 0.0, %v1990
      %1992 = vmatmul.f32.gmra.mxu0 %v1903
      %v1993 = vpop.f32.mrf.mxu0
      %v1994 = vadd.f32 0.0, %v1993
      %1995 = vmatmul.f32.gmra.mxu0 %v1906
      %v1996 = vpop.f32.mrf.mxu0
      %v1997 = vadd.f32 0.0, %v1996
      %1998 = vmatmul.f32.gmra.mxu0 %v1909
      %v1999 = vpop.f32.mrf.mxu0
      %v2000 = vadd.f32 0.0, %v1999
      %2001 = vmatmul.f32.gmra.mxu0 %v1912
      %v2002 = vpop.f32.mrf.mxu0
      %v2003 = vadd.f32 0.0, %v2002
      %2004 = vmatmul.f32.gmra.mxu0 %v1915
      %v2005 = vpop.f32.mrf.mxu0
      %v2006 = vadd.f32 0.0, %v2005
      %2007 = vmatmul.f32.gmra.mxu0 %v1918
      %v2008 = vpop.f32.mrf.mxu0
      %v2009 = vadd.f32 0.0, %v2008
      %2010 = vmatmul.f32.gmra.mxu0 %v1921
      %v2011 = vpop.f32.mrf.mxu0
      %v2012 = vadd.f32 0.0, %v2011
      %2013 = vmatmul.f32.gmra.mxu0 %v1924
      %v2014 = vpop.f32.mrf.mxu0
      %v2015 = vadd.f32 0.0, %v2014
      %2016 = vmatmul.f32.gmra.mxu0 %v1927
      %v2017 = vpop.f32.mrf.mxu0
      %v2018 = vadd.f32 0.0, %v2017
      %2019 = vmatmul.f32.gmra.mxu0 %v1930
      %v2020 = vpop.f32.mrf.mxu0
      %v2021 = vadd.f32 0.0, %v2020
      %2022 = vmatmul.f32.gmra.mxu0 %v1933
      %v2023 = vpop.f32.mrf.mxu0
      %v2024 = vadd.f32 0.0, %v2023
      %2025 = vmatmul.f32.gmra.mxu0 %v1936
      %v2026 = vpop.f32.mrf.mxu0
      %v2027 = vadd.f32 0.0, %v2026
      %2028 = vmatmul.f32.gmra.mxu0 %v1939
      %v2029 = vpop.f32.mrf.mxu0
      %v2030 = vadd.f32 0.0, %v2029
      %2031 = vdwg.mxu0
      %v2032 = vadd.f32 %v1794, %v1961
      %v2033 = vadd.f32 %v1795, %v1964
      %v2034 = vadd.f32 %v1796, %v1967
      %v2035 = vadd.f32 %v1797, %v1970
      %v2036 = vadd.f32 %v1798, %v1973
      %v2037 = vadd.f32 %v1799, %v1976
      %v2038 = vadd.f32 %v1800, %v1979
      %v2039 = vadd.f32 %v1801, %v1982
      %v2040 = vadd.f32 %v1802, %v1985
      %v2041 = vadd.f32 %v1803, %v1988
      %v2042 = vadd.f32 %v1804, %v1991
      %v2043 = vadd.f32 %v1805, %v1994
      %v2044 = vadd.f32 %v1806, %v1997
      %v2045 = vadd.f32 %v1807, %v2000
      %v2046 = vadd.f32 %v1808, %v2003
      %v2047 = vadd.f32 %v1809, %v2006
      %v2048 = vadd.f32 %v1810, %v2009
      %v2049 = vadd.f32 %v1811, %v2012
      %v2050 = vadd.f32 %v1812, %v2015
      %v2051 = vadd.f32 %v1813, %v2018
      %v2052 = vadd.f32 %v1814, %v2021
      %v2053 = vadd.f32 %v1815, %v2024
      %v2054 = vadd.f32 %v1816, %v2027
      %v2055 = vadd.f32 %v1817, %v2030
      %s2056 = scalar_lea.vmem %s1, 1536
      %v2057 = vld [vmem:[%s2056] sm:$0xff]
      %v2058 = vld [vmem:[%s2056 + $0x8] sm:$0xff]
      %v2059 = vld [vmem:[%s2056 + $0x10] sm:$0xff]
      %v2060 = vld [vmem:[%s2056 + $0x18] sm:$0xff]
      %v2061 = vld [vmem:[%s2056 + $0x20] sm:$0xff]
      %v2062 = vld [vmem:[%s2056 + $0x28] sm:$0xff]
      %v2063 = vld [vmem:[%s2056 + $0x30] sm:$0xff]
      %v2064 = vld [vmem:[%s2056 + $0x38] sm:$0xff]
      %v2065 = vld [vmem:[%s2056 + $0x40] sm:$0xff]
      %v2066 = vld [vmem:[%s2056 + $0x48] sm:$0xff]
      %v2067 = vld [vmem:[%s2056 + $0x50] sm:$0xff]
      %v2068 = vld [vmem:[%s2056 + $0x58] sm:$0xff]
      %v2069 = vld [vmem:[%s2056 + $0x60] sm:$0xff]
      %v2070 = vld [vmem:[%s2056 + $0x68] sm:$0xff]
      %v2071 = vld [vmem:[%s2056 + $0x70] sm:$0xff]
      %v2072 = vld [vmem:[%s2056 + $0x78] sm:$0xff]
      %v2073 = vld [vmem:[%s2056 + $0x80] sm:$0xff]
      %v2074 = vld [vmem:[%s2056 + $0x88] sm:$0xff]
      %v2075 = vld [vmem:[%s2056 + $0x90] sm:$0xff]
      %v2076 = vld [vmem:[%s2056 + $0x98] sm:$0xff]
      %v2077 = vld [vmem:[%s2056 + $0xa0] sm:$0xff]
      %v2078 = vld [vmem:[%s2056 + $0xa8] sm:$0xff]
      %v2079 = vld [vmem:[%s2056 + $0xb0] sm:$0xff]
      %v2080 = vld [vmem:[%s2056 + $0xb8] sm:$0xff]
      %2081 = vrot.lane.b32.xlu0 %v207, 114
      %v2082 = vpop.permute.xlu0 %2081
      %2083 = vrot.lane.b32.xlu0 %v208, 114
      %v2084 = vpop.permute.xlu0 %2083
      %2085 = vrot.lane.b32.xlu0 %v209, 114
      %v2086 = vpop.permute.xlu0 %2085
      %2087 = vrot.lane.b32.xlu0 %v210, 114
      %v2088 = vpop.permute.xlu0 %2087
      %2089 = vrot.lane.b32.xlu0 %v211, 114
      %v2090 = vpop.permute.xlu0 %2089
      %2091 = vrot.lane.b32.xlu0 %v212, 114
      %v2092 = vpop.permute.xlu0 %2091
      %2093 = vrot.lane.b32.xlu0 %v213, 114
      %v2094 = vpop.permute.xlu0 %2093
      %2095 = vrot.lane.b32.xlu0 %v214, 114
      %v2096 = vpop.permute.xlu0 %2095
      %2097 = vrot.lane.b32.xlu0 %v215, 114
      %v2098 = vpop.permute.xlu0 %2097
      %v2108 = vsel %vm300, %v2057, 0
      %v2111 = vsel %vm300, %v2058, 0
      %v2114 = vsel %vm300, %v2059, 0
      %v2117 = vsel %vm300, %v2060, 0
      %v2120 = vsel %vm300, %v2061, 0
      %v2123 = vsel %vm300, %v2062, 0
      %v2126 = vsel %vm300, %v2063, 0
      %v2129 = vsel %vm300, %v2064, 0
      %v2132 = vsel %vm300, %v2065, 0
      %v2135 = vsel %vm300, %v2066, 0
      %v2138 = vsel %vm300, %v2067, 0
      %v2141 = vsel %vm300, %v2068, 0
      %v2144 = vsel %vm300, %v2069, 0
      %v2147 = vsel %vm300, %v2070, 0
      %v2150 = vsel %vm300, %v2071, 0
      %v2153 = vsel %vm300, %v2072, 0
      %v2156 = vsel %vm300, %v2073, 0
      %v2159 = vsel %vm300, %v2074, 0
      %v2162 = vsel %vm300, %v2075, 0
      %v2165 = vsel %vm300, %v2076, 0
      %v2168 = vsel %vm300, %v2077, 0
      %v2171 = vsel %vm300, %v2078, 0
      %v2174 = vsel %vm300, %v2079, 0
      %v2177 = vsel %vm300, %v2080, 0
      %v2179 = vsel %vm373, %v2098, 0
      %2181 = vmatpush.msra.mxu0 0.0
      %2182 = vmatpush.msra.mxu0 0.0
      %2183 = vmatpush.msra.mxu0 0.0
      %2184 = vmatpush.msra.mxu0 0.0
      %2185 = vmatpush.msra.mxu0 0.0
      %2186 = vmatpush.msra.mxu0 0.0
      %2187 = vmatpush.msra.mxu0 0.0
      %2188 = vmatpush.msra.mxu0 %v2179
      %2189 = vmatpush.msra.mxu0 %v2096
      %2190 = vmatpush.msra.mxu0 %v2094
      %2191 = vmatpush.msra.mxu0 %v2092
      %2192 = vmatpush.msra.mxu0 %v2090
      %2193 = vmatpush.msra.mxu0 %v2088
      %2194 = vmatpush.msra.mxu0 %v2086
      %2195 = vmatpush.msra.mxu0 %v2084
      %2196 = vmatpush.msra.mxu0 %v2082
      %2197 = vmatmul.f32.gmra.mxu0 %v2108
      %v2198 = vpop.f32.mrf.mxu0
      %v2199 = vadd.f32 0.0, %v2198
      %2200 = vmatmul.f32.gmra.mxu0 %v2111
      %v2201 = vpop.f32.mrf.mxu0
      %v2202 = vadd.f32 0.0, %v2201
      %2203 = vmatmul.f32.gmra.mxu0 %v2114
      %v2204 = vpop.f32.mrf.mxu0
      %v2205 = vadd.f32 0.0, %v2204
      %2206 = vmatmul.f32.gmra.mxu0 %v2117
      %v2207 = vpop.f32.mrf.mxu0
      %v2208 = vadd.f32 0.0, %v2207
      %2209 = vmatmul.f32.gmra.mxu0 %v2120
      %v2210 = vpop.f32.mrf.mxu0
      %v2211 = vadd.f32 0.0, %v2210
      %2212 = vmatmul.f32.gmra.mxu0 %v2123
      %v2213 = vpop.f32.mrf.mxu0
      %v2214 = vadd.f32 0.0, %v2213
      %2215 = vmatmul.f32.gmra.mxu0 %v2126
      %v2216 = vpop.f32.mrf.mxu0
      %v2217 = vadd.f32 0.0, %v2216
      %2218 = vmatmul.f32.gmra.mxu0 %v2129
      %v2219 = vpop.f32.mrf.mxu0
      %v2220 = vadd.f32 0.0, %v2219
      %2221 = vmatmul.f32.gmra.mxu0 %v2132
      %v2222 = vpop.f32.mrf.mxu0
      %v2223 = vadd.f32 0.0, %v2222
      %2224 = vmatmul.f32.gmra.mxu0 %v2135
      %v2225 = vpop.f32.mrf.mxu0
      %v2226 = vadd.f32 0.0, %v2225
      %2227 = vmatmul.f32.gmra.mxu0 %v2138
      %v2228 = vpop.f32.mrf.mxu0
      %v2229 = vadd.f32 0.0, %v2228
      %2230 = vmatmul.f32.gmra.mxu0 %v2141
      %v2231 = vpop.f32.mrf.mxu0
      %v2232 = vadd.f32 0.0, %v2231
      %2233 = vmatmul.f32.gmra.mxu0 %v2144
      %v2234 = vpop.f32.mrf.mxu0
      %v2235 = vadd.f32 0.0, %v2234
      %2236 = vmatmul.f32.gmra.mxu0 %v2147
      %v2237 = vpop.f32.mrf.mxu0
      %v2238 = vadd.f32 0.0, %v2237
      %2239 = vmatmul.f32.gmra.mxu0 %v2150
      %v2240 = vpop.f32.mrf.mxu0
      %v2241 = vadd.f32 0.0, %v2240
      %2242 = vmatmul.f32.gmra.mxu0 %v2153
      %v2243 = vpop.f32.mrf.mxu0
      %v2244 = vadd.f32 0.0, %v2243
      %2245 = vmatmul.f32.gmra.mxu0 %v2156
      %v2246 = vpop.f32.mrf.mxu0
      %v2247 = vadd.f32 0.0, %v2246
      %2248 = vmatmul.f32.gmra.mxu0 %v2159
      %v2249 = vpop.f32.mrf.mxu0
      %v2250 = vadd.f32 0.0, %v2249
      %2251 = vmatmul.f32.gmra.mxu0 %v2162
      %v2252 = vpop.f32.mrf.mxu0
      %v2253 = vadd.f32 0.0, %v2252
      %2254 = vmatmul.f32.gmra.mxu0 %v2165
      %v2255 = vpop.f32.mrf.mxu0
      %v2256 = vadd.f32 0.0, %v2255
      %2257 = vmatmul.f32.gmra.mxu0 %v2168
      %v2258 = vpop.f32.mrf.mxu0
      %v2259 = vadd.f32 0.0, %v2258
      %2260 = vmatmul.f32.gmra.mxu0 %v2171
      %v2261 = vpop.f32.mrf.mxu0
      %v2262 = vadd.f32 0.0, %v2261
      %2263 = vmatmul.f32.gmra.mxu0 %v2174
      %v2264 = vpop.f32.mrf.mxu0
      %v2265 = vadd.f32 0.0, %v2264
      %2266 = vmatmul.f32.gmra.mxu0 %v2177
      %v2267 = vpop.f32.mrf.mxu0
      %v2268 = vadd.f32 0.0, %v2267
      %2269 = vdwg.mxu0
      %v2270 = vadd.f32 %v2032, %v2199
      %v2271 = vadd.f32 %v2033, %v2202
      %v2272 = vadd.f32 %v2034, %v2205
      %v2273 = vadd.f32 %v2035, %v2208
      %v2274 = vadd.f32 %v2036, %v2211
      %v2275 = vadd.f32 %v2037, %v2214
      %v2276 = vadd.f32 %v2038, %v2217
      %v2277 = vadd.f32 %v2039, %v2220
      %v2278 = vadd.f32 %v2040, %v2223
      %v2279 = vadd.f32 %v2041, %v2226
      %v2280 = vadd.f32 %v2042, %v2229
      %v2281 = vadd.f32 %v2043, %v2232
      %v2282 = vadd.f32 %v2044, %v2235
      %v2283 = vadd.f32 %v2045, %v2238
      %v2284 = vadd.f32 %v2046, %v2241
      %v2285 = vadd.f32 %v2047, %v2244
      %v2286 = vadd.f32 %v2048, %v2247
      %v2287 = vadd.f32 %v2049, %v2250
      %v2288 = vadd.f32 %v2050, %v2253
      %v2289 = vadd.f32 %v2051, %v2256
      %v2290 = vadd.f32 %v2052, %v2259
      %v2291 = vadd.f32 %v2053, %v2262
      %v2292 = vadd.f32 %v2054, %v2265
      %v2293 = vadd.f32 %v2055, %v2268
      %v2294 = vld [vmem:[%s2] sm:$0xff]
      %v2295 = vld [vmem:[%s2 + $0x8] sm:$0xff]
      %v2296 = vld [vmem:[%s2 + $0x10] sm:$0xff]
      %v2297 = vld [vmem:[%s2 + $0x18] sm:$0xff]
      %v2298 = vld [vmem:[%s2 + $0x20] sm:$0xff]
      %v2299 = vld [vmem:[%s2 + $0x28] sm:$0xff]
      %v2300 = vld [vmem:[%s2 + $0x30] sm:$0xff]
      %v2301 = vld [vmem:[%s2 + $0x38] sm:$0xff]
      %v2302 = vld [vmem:[%s2 + $0x40] sm:$0xff]
      %v2303 = vld [vmem:[%s2 + $0x48] sm:$0xff]
      %v2304 = vld [vmem:[%s2 + $0x50] sm:$0xff]
      %v2305 = vld [vmem:[%s2 + $0x58] sm:$0xff]
      %v2306 = vld [vmem:[%s2 + $0x60] sm:$0xff]
      %v2307 = vld [vmem:[%s2 + $0x68] sm:$0xff]
      %v2308 = vld [vmem:[%s2 + $0x70] sm:$0xff]
      %v2309 = vld [vmem:[%s2 + $0x78] sm:$0xff]
      %v2310 = vld [vmem:[%s2 + $0x80] sm:$0xff]
      %v2311 = vld [vmem:[%s2 + $0x88] sm:$0xff]
      %v2312 = vld [vmem:[%s2 + $0x90] sm:$0xff]
      %v2313 = vld [vmem:[%s2 + $0x98] sm:$0xff]
      %v2314 = vld [vmem:[%s2 + $0xa0] sm:$0xff]
      %v2315 = vld [vmem:[%s2 + $0xa8] sm:$0xff]
      %v2316 = vld [vmem:[%s2 + $0xb0] sm:$0xff]
      %v2317 = vld [vmem:[%s2 + $0xb8] sm:$0xff]
      %2319 = vset.pattern.permute.xlu0 0
      %2320 = vperm.xlu0 %2319, %v2294
      %v2321 = vpop.permute.xlu0 %2320
      %2324 = vset.pattern.permute.xlu0 0
      %2325 = vperm.xlu0 %2324, %v2295
      %v2326 = vpop.permute.xlu0 %2325
      %2329 = vset.pattern.permute.xlu0 0
      %2330 = vperm.xlu0 %2329, %v2296
      %v2331 = vpop.permute.xlu0 %2330
      %2334 = vset.pattern.permute.xlu0 0
      %2335 = vperm.xlu0 %2334, %v2297
      %v2336 = vpop.permute.xlu0 %2335
      %2339 = vset.pattern.permute.xlu0 0
      %2340 = vperm.xlu0 %2339, %v2298
      %v2341 = vpop.permute.xlu0 %2340
      %2344 = vset.pattern.permute.xlu0 0
      %2345 = vperm.xlu0 %2344, %v2299
      %v2346 = vpop.permute.xlu0 %2345
      %2349 = vset.pattern.permute.xlu0 0
      %2350 = vperm.xlu0 %2349, %v2300
      %v2351 = vpop.permute.xlu0 %2350
      %2354 = vset.pattern.permute.xlu0 0
      %2355 = vperm.xlu0 %2354, %v2301
      %v2356 = vpop.permute.xlu0 %2355
      %2359 = vset.pattern.permute.xlu0 0
      %2360 = vperm.xlu0 %2359, %v2302
      %v2361 = vpop.permute.xlu0 %2360
      %2364 = vset.pattern.permute.xlu0 0
      %2365 = vperm.xlu0 %2364, %v2303
      %v2366 = vpop.permute.xlu0 %2365
      %2369 = vset.pattern.permute.xlu0 0
      %2370 = vperm.xlu0 %2369, %v2304
      %v2371 = vpop.permute.xlu0 %2370
      %2374 = vset.pattern.permute.xlu0 0
      %2375 = vperm.xlu0 %2374, %v2305
      %v2376 = vpop.permute.xlu0 %2375
      %2379 = vset.pattern.permute.xlu0 0
      %2380 = vperm.xlu0 %2379, %v2306
      %v2381 = vpop.permute.xlu0 %2380
      %2384 = vset.pattern.permute.xlu0 0
      %2385 = vperm.xlu0 %2384, %v2307
      %v2386 = vpop.permute.xlu0 %2385
      %2389 = vset.pattern.permute.xlu0 0
      %2390 = vperm.xlu0 %2389, %v2308
      %v2391 = vpop.permute.xlu0 %2390
      %2394 = vset.pattern.permute.xlu0 0
      %2395 = vperm.xlu0 %2394, %v2309
      %v2396 = vpop.permute.xlu0 %2395
      %2399 = vset.pattern.permute.xlu0 0
      %2400 = vperm.xlu0 %2399, %v2310
      %v2401 = vpop.permute.xlu0 %2400
      %2404 = vset.pattern.permute.xlu0 0
      %2405 = vperm.xlu0 %2404, %v2311
      %v2406 = vpop.permute.xlu0 %2405
      %2409 = vset.pattern.permute.xlu0 0
      %2410 = vperm.xlu0 %2409, %v2312
      %v2411 = vpop.permute.xlu0 %2410
      %2414 = vset.pattern.permute.xlu0 0
      %2415 = vperm.xlu0 %2414, %v2313
      %v2416 = vpop.permute.xlu0 %2415
      %2419 = vset.pattern.permute.xlu0 0
      %2420 = vperm.xlu0 %2419, %v2314
      %v2421 = vpop.permute.xlu0 %2420
      %2424 = vset.pattern.permute.xlu0 0
      %2425 = vperm.xlu0 %2424, %v2315
      %v2426 = vpop.permute.xlu0 %2425
      %2429 = vset.pattern.permute.xlu0 0
      %2430 = vperm.xlu0 %2429, %v2316
      %v2431 = vpop.permute.xlu0 %2430
      %2434 = vset.pattern.permute.xlu0 0
      %2435 = vperm.xlu0 %2434, %v2317
      %v2436 = vpop.permute.xlu0 %2435
      %v2438 = vadd.f32 %v2270, %v2321
      %v2439 = vadd.f32 %v2271, %v2326
      %v2440 = vadd.f32 %v2272, %v2331
      %v2441 = vadd.f32 %v2273, %v2336
      %v2442 = vadd.f32 %v2274, %v2341
      %v2443 = vadd.f32 %v2275, %v2346
      %v2444 = vadd.f32 %v2276, %v2351
      %v2445 = vadd.f32 %v2277, %v2356
      %v2446 = vadd.f32 %v2278, %v2361
      %v2447 = vadd.f32 %v2279, %v2366
      %v2448 = vadd.f32 %v2280, %v2371
      %v2449 = vadd.f32 %v2281, %v2376
      %v2450 = vadd.f32 %v2282, %v2381
      %v2451 = vadd.f32 %v2283, %v2386
      %v2452 = vadd.f32 %v2284, %v2391
      %v2453 = vadd.f32 %v2285, %v2396
      %v2454 = vadd.f32 %v2286, %v2401
      %v2455 = vadd.f32 %v2287, %v2406
      %v2456 = vadd.f32 %v2288, %v2411
      %v2457 = vadd.f32 %v2289, %v2416
      %v2458 = vadd.f32 %v2290, %v2421
      %v2459 = vadd.f32 %v2291, %v2426
      %v2460 = vadd.f32 %v2292, %v2431
      %v2461 = vadd.f32 %v2293, %v2436
      %vm2462 = vcmask 195584
      %2463 = vst.msk [vmem:[%s206] sm:$0xff] %vm2462, %v2438
      %2464 = vst.msk [vmem:[%s206 + $0x8] sm:$0xff] %vm2462, %v2439
      %2465 = vst.msk [vmem:[%s206 + $0x10] sm:$0xff] %vm2462, %v2440
      %2466 = vst.msk [vmem:[%s206 + $0x18] sm:$0xff] %vm2462, %v2441
      %2467 = vst.msk [vmem:[%s206 + $0x20] sm:$0xff] %vm2462, %v2442
      %2468 = vst.msk [vmem:[%s206 + $0x28] sm:$0xff] %vm2462, %v2443
      %2469 = vst.msk [vmem:[%s206 + $0x30] sm:$0xff] %vm2462, %v2444
      %2470 = vst.msk [vmem:[%s206 + $0x38] sm:$0xff] %vm2462, %v2445
      %2471 = vst.msk [vmem:[%s206 + $0x40] sm:$0xff] %vm2462, %v2446
      %2472 = vst.msk [vmem:[%s206 + $0x48] sm:$0xff] %vm2462, %v2447
      %2473 = vst.msk [vmem:[%s206 + $0x50] sm:$0xff] %vm2462, %v2448
      %2474 = vst.msk [vmem:[%s206 + $0x58] sm:$0xff] %vm2462, %v2449
      %2475 = vst.msk [vmem:[%s206 + $0x60] sm:$0xff] %vm2462, %v2450
      %2476 = vst.msk [vmem:[%s206 + $0x68] sm:$0xff] %vm2462, %v2451
      %2477 = vst.msk [vmem:[%s206 + $0x70] sm:$0xff] %vm2462, %v2452
      %2478 = vst.msk [vmem:[%s206 + $0x78] sm:$0xff] %vm2462, %v2453
      %2479 = vst.msk [vmem:[%s206 + $0x80] sm:$0xff] %vm2462, %v2454
      %2480 = vst.msk [vmem:[%s206 + $0x88] sm:$0xff] %vm2462, %v2455
      %2481 = vst.msk [vmem:[%s206 + $0x90] sm:$0xff] %vm2462, %v2456
      %2482 = vst.msk [vmem:[%s206 + $0x98] sm:$0xff] %vm2462, %v2457
      %2483 = vst.msk [vmem:[%s206 + $0xa0] sm:$0xff] %vm2462, %v2458
      %2484 = vst.msk [vmem:[%s206 + $0xa8] sm:$0xff] %vm2462, %v2459
      %2485 = vst.msk [vmem:[%s206 + $0xb0] sm:$0xff] %vm2462, %v2460
      %2486 = vst.msk [vmem:[%s206 + $0xb8] sm:$0xff] %vm2462, %v2461
      %p2487 = scmp.lt.s32.totalorder %s18, 1
      %s2488 = scalar_select %p2487, %s18, 1
      %p2489 = scmp.lt.s32.totalorder %s19, 0
      %s2490 = scalar_select %p2489, %s19, 0
      %s2491 = smul.addr %s2490, 24
      %s2492 = smul.addr %s2488, 24
      %s2493 = sadd.s32 %s2491, %s2492
      %s2494 = smul.addr %s2493, 8
      %s2495 = scalar_lea.vmem %s3, %s2494
      // Predicated region
      $region33: #{insensitivity_decoder_forward.1} parent=31 // pred_check
        %p2496 = pneg %p116
      $region34: #{insensitivity_decoder_forward.1} parent=31 // pred_check_branch
        %2498 = sbr.rel (%p2496) target = $region36
      $region35: #{insensitivity_decoder_forward.1} parent=31 // pred_region
        _
      $region36: #{insensitivity_decoder_forward.1} parent=31 // pred_fallthru
        _
    $region32: #{insensitivity_decoder_forward.1} parent=5 // pred_fallthru
      _
    %p2499 = scmp.le.s32.totalorder 2, %s9
    // Predicated region
    $region37: #{insensitivity_decoder_forward.1} parent=5 // pred_check
      %p2500 = pneg %p2499
    $region38: #{insensitivity_decoder_forward.1} parent=5 // pred_check_branch
      %2502 = sbr.rel (%p2500) target = $region40
    $region39: #{insensitivity_decoder_forward.1} parent=5 // pred_region
      %s2503 = ssub.s32 %s9, 2
      // Predicated region
      $region41: #{insensitivity_decoder_forward.1} parent=39 // pred_check
        %p2504 = pneg %p122
      $region42: #{insensitivity_decoder_forward.1} parent=39 // pred_check_branch
        %2506 = sbr.rel (%p2504) target = $region44
      $region43: #{insensitivity_decoder_forward.1} parent=39 // pred_region
        %p2507 = scmp.lt.s32.totalorder %s20, 1
        %s2508 = scalar_select %p2507, %s20, 1
        %p2509 = scmp.lt.s32.totalorder %s21, 0
        %s2510 = scalar_select %p2509, %s21, 0
        %s2511 = smul.addr %s2510, 24
        %s2512 = smul.addr %s2508, 24
        %s2513 = sadd.s32 %s2511, %s2512
        %s2514 = smul.addr %s2513, 8
        %s2515 = scalar_lea.vmem %s3, %s2514
      $region44: #{insensitivity_decoder_forward.1} parent=39 // pred_fallthru
        _
    $region40: #{insensitivity_decoder_forward.1} parent=5 // pred_fallthru
      _
  $region6: #{insensitivity_decoder_forward.1} parent=0 // loop_footer
    %s13 = sadd.s32 1, %s9
  $region7: #{insensitivity_decoder_forward.1} parent=0 // loop_footer_branch
    %8 = sbr.rel target = $region3
  $region8: #{insensitivity_decoder_forward.1} parent=0 // loop_exit
    _

</llo_original>
